<compile_context>
chip_gen: v7x
topology: tpu7x:2x2x1
jax: 0.10.0
libtpu: 0.0.40
codegen_flags: <defaults>
</compile_context>

<pallas_src>
import jax
import jax.numpy as jnp
from jax.experimental import pallas as pl
from jax.experimental.pallas import tpu as pltpu


# ----------------------------- Pallas kernel -------------------------------
def gcn_kernel(x_ref, fwAT_ref, bwAT_ref,
               wc_ref, wf_ref, wb_ref,
               wuc_ref, wuf_ref, wub_ref,
               bc_ref, bf_ref, bb_ref, bu_ref,
               out_ref):
    L = wc_ref.shape[0]

    x = x_ref[...]                       # (N, C) f32, resident across all layers
    fwAT = fwAT_ref[0]                   # (N, N) bf16  = fw_A[b].T
    bwAT = bwAT_ref[0]                   # (N, N) bf16  = bw_A[b].T

    # Static unroll over the 3 GCLayers.  If S/C ever grow, switch to
    # lax.fori_loop to bound live vregs (preventive note, zero cost now).
    for l in range(L):
        wc = wc_ref[l]                   # (C, S) bf16, BN scale folded
        wf = wf_ref[l]
        wb = wb_ref[l]
        wuc = wuc_ref[l]                 # (S, C) bf16, BN scale folded
        wuf = wuf_ref[l]
        wub = wub_ref[l]
        bc = bc_ref[l]                   # (1, S) f32
        bfb = bf_ref[l]                  # (1, S)
        bb = bb_ref[l]                   # (1, S)
        bu = bu_ref[l]                   # (1, C)

        xb = x.astype(jnp.bfloat16)

        # Three separate, lane-aligned projection matmuls (no merged slab,
        # no in-lane slicing).  bf16 operands, f32 accumulation.
        cond = jnp.maximum(
            jnp.dot(xb, wc, preferred_element_type=jnp.float32) + bc, 0.0)
        fwt = jnp.dot(xb, wf, preferred_element_type=jnp.float32)   # (N, S)
        bwt = jnp.dot(xb, wb, preferred_element_type=jnp.float32)   # (N, S)

        # Adjacency contraction on pre-transposed A (done once in the wrapper):
        #   out[n, s] = sum_m A[m, n] * y[m, s]  ==  A.T @ y
        fw_msg = jnp.maximum(
            jnp.dot(fwAT, fwt.astype(jnp.bfloat16),
                    preferred_element_type=jnp.float32) + bfb, 0.0)
        bw_msg = jnp.maximum(
            jnp.dot(bwAT, bwt.astype(jnp.bfloat16),
                    preferred_element_type=jnp.float32) + bb, 0.0)

        # updated = relu(BN(update(cat(cond, fw, bw))) + x)
        # concat eliminated: three accumulating dots against pre-split wu blocks.
        upd = (jnp.dot(cond.astype(jnp.bfloat16), wuc,
                       preferred_element_type=jnp.float32)
               + jnp.dot(fw_msg.astype(jnp.bfloat16), wuf,
                         preferred_element_type=jnp.float32)
               + jnp.dot(bw_msg.astype(jnp.bfloat16), wub,
                         preferred_element_type=jnp.float32)
               + bu)
        x = jnp.maximum(upd + x, 0.0)    # residual + relu in f32

    out_ref[...] = x.astype(out_ref.dtype)


# ----------------------------- wrapper (glue) -------------------------------
def fold_bn_into_conv(w_oi, gamma, beta, mean, var, eps=1e-5):
    """Fold eval-mode BatchNorm1d into a 1x1-conv weight.

    w_oi: (out, in) conv weight.  Returns (in, out) weight (ready for x @ w)
    with the BN scale absorbed, plus a (1, out) bias.
    """
    scale = gamma / jnp.sqrt(var + eps)
    w_folded = (w_oi * scale[:, None]).T.astype(jnp.float32)
    bias = (beta - mean * scale)[None, :].astype(jnp.float32)
    return w_folded, bias


@jax.jit
def gcn_forward(states, fw_A, bw_A, params):
    """Fused 3-layer GCN forward.  states: (B, N, in_size).  The PyTorch
    permutes are identity in this channels-last layout."""
    B, N, C = states.shape
    L = len(params)
    S = params[0]["bc"].shape[-1]
    bf16 = jnp.bfloat16

    # Per-layer params, stacked over layers.  Matmul operands -> bf16.
    wc = jnp.stack([p["wc"] for p in params]).astype(bf16)          # (L, C, S)
    wf = jnp.stack([p["wf"] for p in params]).astype(bf16)          # (L, C, S)
    wb = jnp.stack([p["wb"] for p in params]).astype(bf16)          # (L, C, S)
    wuc = jnp.stack([p["wu"][0:S] for p in params]).astype(bf16)    # (L, S, C)
    wuf = jnp.stack([p["wu"][S:2 * S] for p in params]).astype(bf16)
    wub = jnp.stack([p["wu"][2 * S:3 * S] for p in params]).astype(bf16)
    bc = jnp.stack([p["bc"] for p in params])                       # (L, 1, S) f32
    bfb = jnp.stack([p["bf"] for p in params])
    bb = jnp.stack([p["bb"] for p in params])
    bu = jnp.stack([p["bu"] for p in params])                       # (L, 1, C) f32

    # Pre-transpose adjacencies once so the kernel uses plain contractions.
    fw_AT = jnp.transpose(fw_A, (0, 2, 1)).astype(bf16)
    bw_AT = jnp.transpose(bw_A, (0, 2, 1)).astype(bf16)

    x2 = states.reshape(B * N, C).astype(jnp.float32)

    # Advisory cost estimate.
    flops = L * B * (12 * N * C * S + 4 * N * N * S)
    bytes_accessed = (4 * 2 * B * N * C            # x in + out (f32)
                      + 2 * 2 * B * N * N          # adjacencies (bf16)
                      + 2 * L * 6 * C * S          # weights (bf16)
                      + 4 * L * (3 * S + C))       # biases (f32)

    def idx3(b):
        return (0, 0, 0)

    out = pl.pallas_call(
        gcn_kernel,
        out_shape=jax.ShapeDtypeStruct((B * N, C), jnp.float32),
        grid_spec=pltpu.PrefetchScalarGridSpec(
            num_scalar_prefetch=0,
            grid=(B,),                                        # one batch per step
            in_specs=[
                pl.BlockSpec((N, C), lambda b: (b, 0)),       # x rows of batch b
                pl.BlockSpec((1, N, N), lambda b: (b, 0, 0)), # fw_A[b]^T
                pl.BlockSpec((1, N, N), lambda b: (b, 0, 0)), # bw_A[b]^T
                pl.BlockSpec((L, C, S), idx3),                # wc (all layers)
                pl.BlockSpec((L, C, S), idx3),                # wf
                pl.BlockSpec((L, C, S), idx3),                # wb
                pl.BlockSpec((L, S, C), idx3),                # wu[:S]
                pl.BlockSpec((L, S, C), idx3),                # wu[S:2S]
                pl.BlockSpec((L, S, C), idx3),                # wu[2S:3S]
                pl.BlockSpec((L, 1, S), idx3),                # bc
                pl.BlockSpec((L, 1, S), idx3),                # bf
                pl.BlockSpec((L, 1, S), idx3),                # bb
                pl.BlockSpec((L, 1, C), idx3),                # bu
            ],
            out_specs=pl.BlockSpec((N, C), lambda b: (b, 0)),
        ),
        compiler_params=pltpu.CompilerParams(
            dimension_semantics=("parallel",),     # batches shard across v7x TCs
            vmem_limit_bytes=32 * 1024 * 1024),    # explicit, safe on v5e/v6e/v7x
        cost_estimate=pl.CostEstimate(
            flops=flops, transcendentals=0, bytes_accessed=bytes_accessed),
    )(x2, fw_AT, bw_AT, wc, wf, wb, wuc, wuf, wub, bc, bfb, bb, bu)

    return out.reshape(B, N, C)


# ----------------------------- params / reference ---------------------------
def make_layer_params(key, in_size, state_size):
    ks = jax.random.split(key, 8)

    def conv_w(k, out_c, in_c):
        # deterministic stand-in for PyTorch's kaiming-uniform init
        bound = 1.0 / jnp.sqrt(in_c)
        return jax.random.uniform(k, (out_c, in_c), jnp.float32, -bound, bound)

    def bn_params(k, c):
        k1, k2, k3, k4 = jax.random.split(k, 4)
        gamma = jax.random.uniform(k1, (c,), jnp.float32, 0.5, 1.5)
        beta = 0.1 * jax.random.normal(k2, (c,), jnp.float32)
        mean = 0.1 * jax.random.normal(k3, (c,), jnp.float32)
        var = jax.random.uniform(k4, (c,), jnp.float32, 0.5, 1.5)
        return gamma, beta, mean, var

    wc, bc = fold_bn_into_conv(conv_w(ks[0], state_size, in_size), *bn_params(ks[1], state_size))
    wf, bf = fold_bn_into_conv(conv_w(ks[2], state_size, in_size), *bn_params(ks[3], state_size))
    wb, bb = fold_bn_into_conv(conv_w(ks[4], state_size, in_size), *bn_params(ks[5], state_size))
    wu, bu = fold_bn_into_conv(conv_w(ks[6], in_size, 3 * state_size), *bn_params(ks[7], in_size))
    return dict(wc=wc, bc=bc, wf=wf, bf=bf, wb=wb, bb=bb, wu=wu, bu=bu)


def gclayer_ref(x, fw_A, bw_A, p, S):
    """Pure-JAX reference mirroring the kernel's bf16 matmul operands +
    f32 accumulation, so the allclose check is tight."""
    bf16 = jnp.bfloat16
    f32 = jnp.float32
    xb = x.astype(bf16)
    wc, wf, wb = p["wc"].astype(bf16), p["wf"].astype(bf16), p["wb"].astype(bf16)
    wu = p["wu"].astype(bf16)
    fwA, bwA = fw_A.astype(bf16), bw_A.astype(bf16)

    cond = jax.nn.relu(
        jnp.einsum("bnc,cs->bns", xb, wc, preferred_element_type=f32) + p["bc"])
    fwt = jnp.einsum("bnc,cs->bns", xb, wf, preferred_element_type=f32)
    fw = jax.nn.relu(
        jnp.einsum("bmn,bms->bns", fwA, fwt.astype(bf16),
                   preferred_element_type=f32) + p["bf"])
    bwt = jnp.einsum("bnc,cs->bns", xb, wb, preferred_element_type=f32)
    bw = jax.nn.relu(
        jnp.einsum("bmn,bms->bns", bwA, bwt.astype(bf16),
                   preferred_element_type=f32) + p["bb"])
    upd = (jnp.einsum("bns,sc->bnc", cond.astype(bf16), wu[0:S],
                      preferred_element_type=f32)
           + jnp.einsum("bns,sc->bnc", fw.astype(bf16), wu[S:2 * S],
                        preferred_element_type=f32)
           + jnp.einsum("bns,sc->bnc", bw.astype(bf16), wu[2 * S:3 * S],
                        preferred_element_type=f32)
           + p["bu"])
    return jax.nn.relu(upd + x)


def gcn_ref(states, fw_A, bw_A, params, S):
    for lp in params:
        states = gclayer_ref(states, fw_A, bw_A, lp, S)
    return states


# --------------------------------- main --------------------------------------
if __name__ == "__main__":
    B, N, IN_SIZE, STATE_SIZE = 2, 16, 32, 16

    key = jax.random.PRNGKey(0)
    k_x, k_fw, k_bw, k_p1, k_p2, k_p3 = jax.random.split(key, 6)

    states = jax.random.normal(k_x, (B, N, IN_SIZE), jnp.float32)
    fw_A = jax.random.uniform(k_fw, (B, N, N), jnp.float32)
    bw_A = jax.random.uniform(k_bw, (B, N, N), jnp.float32)
    # row-normalize adjacencies (typical GCN usage; values stay well-scaled)
    fw_A = fw_A / jnp.sum(fw_A, axis=1, keepdims=True)
    bw_A = bw_A / jnp.sum(bw_A, axis=1, keepdims=True)

    params = [make_layer_params(k, IN_SIZE, STATE_SIZE)
              for k in (k_p1, k_p2, k_p3)]

    out = gcn_forward(states, fw_A, bw_A, params)
    out = jax.block_until_ready(out)

    ref = gcn_ref(states, fw_A, bw_A, params, STATE_SIZE)
    assert out.shape == (B, N, IN_SIZE)
    max_err = float(jnp.max(jnp.abs(out - ref)))
    assert jnp.allclose(out, ref, atol=2e-3, rtol=2e-3), \
        f"mismatch vs JAX reference (max abs err {max_err})"

    print("KERNEL_OK")
</pallas_src>

<mosaic_0001>
module attributes {stable_mosaic.version = 11 : i64} {
  func.func @gcn_kernel(%arg0: i32, %arg1: memref<16x32xf32, #tpu.memory_space<vmem>>, %arg2: memref<1x16x16xbf16, #tpu.memory_space<vmem>>, %arg3: memref<1x16x16xbf16, #tpu.memory_space<vmem>>, %arg4: memref<3x32x16xbf16, #tpu.memory_space<vmem>>, %arg5: memref<3x32x16xbf16, #tpu.memory_space<vmem>>, %arg6: memref<3x32x16xbf16, #tpu.memory_space<vmem>>, %arg7: memref<3x16x32xbf16, #tpu.memory_space<vmem>>, %arg8: memref<3x16x32xbf16, #tpu.memory_space<vmem>>, %arg9: memref<3x16x32xbf16, #tpu.memory_space<vmem>>, %arg10: memref<3x1x16xf32, #tpu.memory_space<vmem>>, %arg11: memref<3x1x16xf32, #tpu.memory_space<vmem>>, %arg12: memref<3x1x16xf32, #tpu.memory_space<vmem>>, %arg13: memref<3x1x32xf32, #tpu.memory_space<vmem>>, %arg14: memref<16x32xf32, #tpu.memory_space<vmem>>) attributes {dimension_semantics = [#tpu.dimension_semantics<parallel>], iteration_bounds = array<i64: 2>, scalar_prefetch = 0 : i64, scratch_operands = 0 : i64, tpu.core_type = #tpu.core_type<tc>, window_params = [{transform_indices = @transform_0, window_bounds = array<i64: 16, 32>}, {transform_indices = @transform_1, window_bounds = array<i64: 1, 16, 16>}, {transform_indices = @transform_2, window_bounds = array<i64: 1, 16, 16>}, {pipeline_mode = #tpu.pipeline_mode<synchronous>, transform_indices = @transform_3, window_bounds = array<i64: 3, 32, 16>}, {pipeline_mode = #tpu.pipeline_mode<synchronous>, transform_indices = @transform_4, window_bounds = array<i64: 3, 32, 16>}, {pipeline_mode = #tpu.pipeline_mode<synchronous>, transform_indices = @transform_5, window_bounds = array<i64: 3, 32, 16>}, {pipeline_mode = #tpu.pipeline_mode<synchronous>, transform_indices = @transform_6, window_bounds = array<i64: 3, 16, 32>}, {pipeline_mode = #tpu.pipeline_mode<synchronous>, transform_indices = @transform_7, window_bounds = array<i64: 3, 16, 32>}, {pipeline_mode = #tpu.pipeline_mode<synchronous>, transform_indices = @transform_8, window_bounds = array<i64: 3, 16, 32>}, {pipeline_mode = #tpu.pipeline_mode<synchronous>, transform_indices = @transform_9, window_bounds = array<i64: 3, 1, 16>}, {pipeline_mode = #tpu.pipeline_mode<synchronous>, transform_indices = @transform_10, window_bounds = array<i64: 3, 1, 16>}, {pipeline_mode = #tpu.pipeline_mode<synchronous>, transform_indices = @transform_11, window_bounds = array<i64: 3, 1, 16>}, {pipeline_mode = #tpu.pipeline_mode<synchronous>, transform_indices = @transform_12, window_bounds = array<i64: 3, 1, 32>}, {transform_indices = @transform_13, window_bounds = array<i64: 16, 32>}]} {
    %c0 = arith.constant 0 : index
    %c0_0 = arith.constant 0 : index
    %0 = vector.load %arg1[%c0, %c0_0] : memref<16x32xf32, #tpu.memory_space<vmem>>, vector<16x32xf32>
    %c0_1 = arith.constant 0 : index
    %c0_2 = arith.constant 0 : index
    %c0_3 = arith.constant 0 : index
    %1 = vector.load %arg2[%c0_1, %c0_2, %c0_3] : memref<1x16x16xbf16, #tpu.memory_space<vmem>>, vector<1x16x16xbf16>
    %2 = vector.shape_cast %1 : vector<1x16x16xbf16> to vector<16x16xbf16>
    %c0_4 = arith.constant 0 : index
    %c0_5 = arith.constant 0 : index
    %c0_6 = arith.constant 0 : index
    %3 = vector.load %arg3[%c0_4, %c0_5, %c0_6] : memref<1x16x16xbf16, #tpu.memory_space<vmem>>, vector<1x16x16xbf16>
    %4 = vector.shape_cast %3 : vector<1x16x16xbf16> to vector<16x16xbf16>
    %c0_7 = arith.constant 0 : index
    %c0_8 = arith.constant 0 : index
    %c0_9 = arith.constant 0 : index
    %5 = vector.load %arg4[%c0_7, %c0_8, %c0_9] : memref<3x32x16xbf16, #tpu.memory_space<vmem>>, vector<1x32x16xbf16>
    %6 = vector.shape_cast %5 : vector<1x32x16xbf16> to vector<32x16xbf16>
    %c0_10 = arith.constant 0 : index
    %c0_11 = arith.constant 0 : index
    %c0_12 = arith.constant 0 : index
    %7 = vector.load %arg5[%c0_10, %c0_11, %c0_12] : memref<3x32x16xbf16, #tpu.memory_space<vmem>>, vector<1x32x16xbf16>
    %8 = vector.shape_cast %7 : vector<1x32x16xbf16> to vector<32x16xbf16>
    %c0_13 = arith.constant 0 : index
    %c0_14 = arith.constant 0 : index
    %c0_15 = arith.constant 0 : index
    %9 = vector.load %arg6[%c0_13, %c0_14, %c0_15] : memref<3x32x16xbf16, #tpu.memory_space<vmem>>, vector<1x32x16xbf16>
    %10 = vector.shape_cast %9 : vector<1x32x16xbf16> to vector<32x16xbf16>
    %c0_16 = arith.constant 0 : index
    %c0_17 = arith.constant 0 : index
    %c0_18 = arith.constant 0 : index
    %11 = vector.load %arg7[%c0_16, %c0_17, %c0_18] : memref<3x16x32xbf16, #tpu.memory_space<vmem>>, vector<1x16x32xbf16>
    %12 = vector.shape_cast %11 : vector<1x16x32xbf16> to vector<16x32xbf16>
    %c0_19 = arith.constant 0 : index
    %c0_20 = arith.constant 0 : index
    %c0_21 = arith.constant 0 : index
    %13 = vector.load %arg8[%c0_19, %c0_20, %c0_21] : memref<3x16x32xbf16, #tpu.memory_space<vmem>>, vector<1x16x32xbf16>
    %14 = vector.shape_cast %13 : vector<1x16x32xbf16> to vector<16x32xbf16>
    %c0_22 = arith.constant 0 : index
    %c0_23 = arith.constant 0 : index
    %c0_24 = arith.constant 0 : index
    %15 = vector.load %arg9[%c0_22, %c0_23, %c0_24] : memref<3x16x32xbf16, #tpu.memory_space<vmem>>, vector<1x16x32xbf16>
    %16 = vector.shape_cast %15 : vector<1x16x32xbf16> to vector<16x32xbf16>
    %c0_25 = arith.constant 0 : index
    %c0_26 = arith.constant 0 : index
    %c0_27 = arith.constant 0 : index
    %17 = vector.load %arg10[%c0_25, %c0_26, %c0_27] : memref<3x1x16xf32, #tpu.memory_space<vmem>>, vector<1x1x16xf32>
    %18 = vector.shape_cast %17 : vector<1x1x16xf32> to vector<1x16xf32>
    %c0_28 = arith.constant 0 : index
    %c0_29 = arith.constant 0 : index
    %c0_30 = arith.constant 0 : index
    %19 = vector.load %arg11[%c0_28, %c0_29, %c0_30] : memref<3x1x16xf32, #tpu.memory_space<vmem>>, vector<1x1x16xf32>
    %20 = vector.shape_cast %19 : vector<1x1x16xf32> to vector<1x16xf32>
    %c0_31 = arith.constant 0 : index
    %c0_32 = arith.constant 0 : index
    %c0_33 = arith.constant 0 : index
    %21 = vector.load %arg12[%c0_31, %c0_32, %c0_33] : memref<3x1x16xf32, #tpu.memory_space<vmem>>, vector<1x1x16xf32>
    %22 = vector.shape_cast %21 : vector<1x1x16xf32> to vector<1x16xf32>
    %c0_34 = arith.constant 0 : index
    %c0_35 = arith.constant 0 : index
    %c0_36 = arith.constant 0 : index
    %23 = vector.load %arg13[%c0_34, %c0_35, %c0_36] : memref<3x1x32xf32, #tpu.memory_space<vmem>>, vector<1x1x32xf32>
    %24 = vector.shape_cast %23 : vector<1x1x32xf32> to vector<1x32xf32>
    %25 = arith.truncf %0 : vector<16x32xf32> to vector<16x32xbf16>
    %cst = arith.constant dense<0.000000e+00> : vector<16x16xf32>
    %26 = tpu.matmul %25, %6, %cst {dimension_numbers = #tpu.dot_dimension_numbers<[1], [0], [0], [1], [0, 0, 1, 1], [], []>} : vector<16x32xbf16>, vector<32x16xbf16>, vector<16x16xf32> -> vector<16x16xf32>
    %27 = vector.broadcast %18 : vector<1x16xf32> to vector<16x16xf32>
    %28 = arith.addf %26, %27 : vector<16x16xf32>
    %cst_37 = arith.constant 0.000000e+00 : f32
    %29 = vector.broadcast %cst_37 : f32 to vector<16x16xf32>
    %30 = arith.maximumf %28, %29 : vector<16x16xf32>
    %cst_38 = arith.constant dense<0.000000e+00> : vector<16x16xf32>
    %31 = tpu.matmul %25, %8, %cst_38 {dimension_numbers = #tpu.dot_dimension_numbers<[1], [0], [0], [1], [0, 0, 1, 1], [], []>} : vector<16x32xbf16>, vector<32x16xbf16>, vector<16x16xf32> -> vector<16x16xf32>
    %cst_39 = arith.constant dense<0.000000e+00> : vector<16x16xf32>
    %32 = tpu.matmul %25, %10, %cst_39 {dimension_numbers = #tpu.dot_dimension_numbers<[1], [0], [0], [1], [0, 0, 1, 1], [], []>} : vector<16x32xbf16>, vector<32x16xbf16>, vector<16x16xf32> -> vector<16x16xf32>
    %33 = arith.truncf %31 : vector<16x16xf32> to vector<16x16xbf16>
    %cst_40 = arith.constant dense<0.000000e+00> : vector<16x16xf32>
    %34 = tpu.matmul %2, %33, %cst_40 {dimension_numbers = #tpu.dot_dimension_numbers<[1], [0], [0], [1], [0, 0, 1, 1], [], []>} : vector<16x16xbf16>, vector<16x16xbf16>, vector<16x16xf32> -> vector<16x16xf32>
    %35 = vector.broadcast %20 : vector<1x16xf32> to vector<16x16xf32>
    %36 = arith.addf %34, %35 : vector<16x16xf32>
    %cst_41 = arith.constant 0.000000e+00 : f32
    %37 = vector.broadcast %cst_41 : f32 to vector<16x16xf32>
    %38 = arith.maximumf %36, %37 : vector<16x16xf32>
    %39 = arith.truncf %32 : vector<16x16xf32> to vector<16x16xbf16>
    %cst_42 = arith.constant dense<0.000000e+00> : vector<16x16xf32>
    %40 = tpu.matmul %4, %39, %cst_42 {dimension_numbers = #tpu.dot_dimension_numbers<[1], [0], [0], [1], [0, 0, 1, 1], [], []>} : vector<16x16xbf16>, vector<16x16xbf16>, vector<16x16xf32> -> vector<16x16xf32>
    %41 = vector.broadcast %22 : vector<1x16xf32> to vector<16x16xf32>
    %42 = arith.addf %40, %41 : vector<16x16xf32>
    %cst_43 = arith.constant 0.000000e+00 : f32
    %43 = vector.broadcast %cst_43 : f32 to vector<16x16xf32>
    %44 = arith.maximumf %42, %43 : vector<16x16xf32>
    %45 = arith.truncf %30 : vector<16x16xf32> to vector<16x16xbf16>
    %cst_44 = arith.constant dense<0.000000e+00> : vector<16x32xf32>
    %46 = tpu.matmul %45, %12, %cst_44 {dimension_numbers = #tpu.dot_dimension_numbers<[1], [0], [0], [1], [0, 0, 1, 1], [], []>} : vector<16x16xbf16>, vector<16x32xbf16>, vector<16x32xf32> -> vector<16x32xf32>
    %47 = arith.truncf %38 : vector<16x16xf32> to vector<16x16xbf16>
    %cst_45 = arith.constant dense<0.000000e+00> : vector<16x32xf32>
    %48 = tpu.matmul %47, %14, %cst_45 {dimension_numbers = #tpu.dot_dimension_numbers<[1], [0], [0], [1], [0, 0, 1, 1], [], []>} : vector<16x16xbf16>, vector<16x32xbf16>, vector<16x32xf32> -> vector<16x32xf32>
    %49 = arith.addf %46, %48 : vector<16x32xf32>
    %50 = arith.truncf %44 : vector<16x16xf32> to vector<16x16xbf16>
    %cst_46 = arith.constant dense<0.000000e+00> : vector<16x32xf32>
    %51 = tpu.matmul %50, %16, %cst_46 {dimension_numbers = #tpu.dot_dimension_numbers<[1], [0], [0], [1], [0, 0, 1, 1], [], []>} : vector<16x16xbf16>, vector<16x32xbf16>, vector<16x32xf32> -> vector<16x32xf32>
    %52 = arith.addf %49, %51 : vector<16x32xf32>
    %53 = vector.broadcast %24 : vector<1x32xf32> to vector<16x32xf32>
    %54 = arith.addf %52, %53 : vector<16x32xf32>
    %55 = arith.addf %54, %0 : vector<16x32xf32>
    %cst_47 = arith.constant 0.000000e+00 : f32
    %56 = vector.broadcast %cst_47 : f32 to vector<16x32xf32>
    %57 = arith.maximumf %55, %56 : vector<16x32xf32>
    %c1 = arith.constant 1 : index
    %c0_48 = arith.constant 0 : index
    %c0_49 = arith.constant 0 : index
    %58 = vector.load %arg4[%c1, %c0_48, %c0_49] : memref<3x32x16xbf16, #tpu.memory_space<vmem>>, vector<1x32x16xbf16>
    %59 = vector.shape_cast %58 : vector<1x32x16xbf16> to vector<32x16xbf16>
    %c1_50 = arith.constant 1 : index
    %c0_51 = arith.constant 0 : index
    %c0_52 = arith.constant 0 : index
    %60 = vector.load %arg5[%c1_50, %c0_51, %c0_52] : memref<3x32x16xbf16, #tpu.memory_space<vmem>>, vector<1x32x16xbf16>
    %61 = vector.shape_cast %60 : vector<1x32x16xbf16> to vector<32x16xbf16>
    %c1_53 = arith.constant 1 : index
    %c0_54 = arith.constant 0 : index
    %c0_55 = arith.constant 0 : index
    %62 = vector.load %arg6[%c1_53, %c0_54, %c0_55] : memref<3x32x16xbf16, #tpu.memory_space<vmem>>, vector<1x32x16xbf16>
    %63 = vector.shape_cast %62 : vector<1x32x16xbf16> to vector<32x16xbf16>
    %c1_56 = arith.constant 1 : index
    %c0_57 = arith.constant 0 : index
    %c0_58 = arith.constant 0 : index
    %64 = vector.load %arg7[%c1_56, %c0_57, %c0_58] : memref<3x16x32xbf16, #tpu.memory_space<vmem>>, vector<1x16x32xbf16>
    %65 = vector.shape_cast %64 : vector<1x16x32xbf16> to vector<16x32xbf16>
    %c1_59 = arith.constant 1 : index
    %c0_60 = arith.constant 0 : index
    %c0_61 = arith.constant 0 : index
    %66 = vector.load %arg8[%c1_59, %c0_60, %c0_61] : memref<3x16x32xbf16, #tpu.memory_space<vmem>>, vector<1x16x32xbf16>
    %67 = vector.shape_cast %66 : vector<1x16x32xbf16> to vector<16x32xbf16>
    %c1_62 = arith.constant 1 : index
    %c0_63 = arith.constant 0 : index
    %c0_64 = arith.constant 0 : index
    %68 = vector.load %arg9[%c1_62, %c0_63, %c0_64] : memref<3x16x32xbf16, #tpu.memory_space<vmem>>, vector<1x16x32xbf16>
    %69 = vector.shape_cast %68 : vector<1x16x32xbf16> to vector<16x32xbf16>
    %c1_65 = arith.constant 1 : index
    %c0_66 = arith.constant 0 : index
    %c0_67 = arith.constant 0 : index
    %70 = vector.load %arg10[%c1_65, %c0_66, %c0_67] : memref<3x1x16xf32, #tpu.memory_space<vmem>>, vector<1x1x16xf32>
    %71 = vector.shape_cast %70 : vector<1x1x16xf32> to vector<1x16xf32>
    %c1_68 = arith.constant 1 : index
    %c0_69 = arith.constant 0 : index
    %c0_70 = arith.constant 0 : index
    %72 = vector.load %arg11[%c1_68, %c0_69, %c0_70] : memref<3x1x16xf32, #tpu.memory_space<vmem>>, vector<1x1x16xf32>
    %73 = vector.shape_cast %72 : vector<1x1x16xf32> to vector<1x16xf32>
    %c1_71 = arith.constant 1 : index
    %c0_72 = arith.constant 0 : index
    %c0_73 = arith.constant 0 : index
    %74 = vector.load %arg12[%c1_71, %c0_72, %c0_73] : memref<3x1x16xf32, #tpu.memory_space<vmem>>, vector<1x1x16xf32>
    %75 = vector.shape_cast %74 : vector<1x1x16xf32> to vector<1x16xf32>
    %c1_74 = arith.constant 1 : index
    %c0_75 = arith.constant 0 : index
    %c0_76 = arith.constant 0 : index
    %76 = vector.load %arg13[%c1_74, %c0_75, %c0_76] : memref<3x1x32xf32, #tpu.memory_space<vmem>>, vector<1x1x32xf32>
    %77 = vector.shape_cast %76 : vector<1x1x32xf32> to vector<1x32xf32>
    %78 = arith.truncf %57 : vector<16x32xf32> to vector<16x32xbf16>
    %cst_77 = arith.constant dense<0.000000e+00> : vector<16x16xf32>
    %79 = tpu.matmul %78, %59, %cst_77 {dimension_numbers = #tpu.dot_dimension_numbers<[1], [0], [0], [1], [0, 0, 1, 1], [], []>} : vector<16x32xbf16>, vector<32x16xbf16>, vector<16x16xf32> -> vector<16x16xf32>
    %80 = vector.broadcast %71 : vector<1x16xf32> to vector<16x16xf32>
    %81 = arith.addf %79, %80 : vector<16x16xf32>
    %cst_78 = arith.constant 0.000000e+00 : f32
    %82 = vector.broadcast %cst_78 : f32 to vector<16x16xf32>
    %83 = arith.maximumf %81, %82 : vector<16x16xf32>
    %cst_79 = arith.constant dense<0.000000e+00> : vector<16x16xf32>
    %84 = tpu.matmul %78, %61, %cst_79 {dimension_numbers = #tpu.dot_dimension_numbers<[1], [0], [0], [1], [0, 0, 1, 1], [], []>} : vector<16x32xbf16>, vector<32x16xbf16>, vector<16x16xf32> -> vector<16x16xf32>
    %cst_80 = arith.constant dense<0.000000e+00> : vector<16x16xf32>
    %85 = tpu.matmul %78, %63, %cst_80 {dimension_numbers = #tpu.dot_dimension_numbers<[1], [0], [0], [1], [0, 0, 1, 1], [], []>} : vector<16x32xbf16>, vector<32x16xbf16>, vector<16x16xf32> -> vector<16x16xf32>
    %86 = arith.truncf %84 : vector<16x16xf32> to vector<16x16xbf16>
    %cst_81 = arith.constant dense<0.000000e+00> : vector<16x16xf32>
    %87 = tpu.matmul %2, %86, %cst_81 {dimension_numbers = #tpu.dot_dimension_numbers<[1], [0], [0], [1], [0, 0, 1, 1], [], []>} : vector<16x16xbf16>, vector<16x16xbf16>, vector<16x16xf32> -> vector<16x16xf32>
    %88 = vector.broadcast %73 : vector<1x16xf32> to vector<16x16xf32>
    %89 = arith.addf %87, %88 : vector<16x16xf32>
    %cst_82 = arith.constant 0.000000e+00 : f32
    %90 = vector.broadcast %cst_82 : f32 to vector<16x16xf32>
    %91 = arith.maximumf %89, %90 : vector<16x16xf32>
    %92 = arith.truncf %85 : vector<16x16xf32> to vector<16x16xbf16>
    %cst_83 = arith.constant dense<0.000000e+00> : vector<16x16xf32>
    %93 = tpu.matmul %4, %92, %cst_83 {dimension_numbers = #tpu.dot_dimension_numbers<[1], [0], [0], [1], [0, 0, 1, 1], [], []>} : vector<16x16xbf16>, vector<16x16xbf16>, vector<16x16xf32> -> vector<16x16xf32>
    %94 = vector.broadcast %75 : vector<1x16xf32> to vector<16x16xf32>
    %95 = arith.addf %93, %94 : vector<16x16xf32>
    %cst_84 = arith.constant 0.000000e+00 : f32
    %96 = vector.broadcast %cst_84 : f32 to vector<16x16xf32>
    %97 = arith.maximumf %95, %96 : vector<16x16xf32>
    %98 = arith.truncf %83 : vector<16x16xf32> to vector<16x16xbf16>
    %cst_85 = arith.constant dense<0.000000e+00> : vector<16x32xf32>
    %99 = tpu.matmul %98, %65, %cst_85 {dimension_numbers = #tpu.dot_dimension_numbers<[1], [0], [0], [1], [0, 0, 1, 1], [], []>} : vector<16x16xbf16>, vector<16x32xbf16>, vector<16x32xf32> -> vector<16x32xf32>
    %100 = arith.truncf %91 : vector<16x16xf32> to vector<16x16xbf16>
    %cst_86 = arith.constant dense<0.000000e+00> : vector<16x32xf32>
    %101 = tpu.matmul %100, %67, %cst_86 {dimension_numbers = #tpu.dot_dimension_numbers<[1], [0], [0], [1], [0, 0, 1, 1], [], []>} : vector<16x16xbf16>, vector<16x32xbf16>, vector<16x32xf32> -> vector<16x32xf32>
    %102 = arith.addf %99, %101 : vector<16x32xf32>
    %103 = arith.truncf %97 : vector<16x16xf32> to vector<16x16xbf16>
    %cst_87 = arith.constant dense<0.000000e+00> : vector<16x32xf32>
    %104 = tpu.matmul %103, %69, %cst_87 {dimension_numbers = #tpu.dot_dimension_numbers<[1], [0], [0], [1], [0, 0, 1, 1], [], []>} : vector<16x16xbf16>, vector<16x32xbf16>, vector<16x32xf32> -> vector<16x32xf32>
    %105 = arith.addf %102, %104 : vector<16x32xf32>
    %106 = vector.broadcast %77 : vector<1x32xf32> to vector<16x32xf32>
    %107 = arith.addf %105, %106 : vector<16x32xf32>
    %108 = arith.addf %107, %57 : vector<16x32xf32>
    %cst_88 = arith.constant 0.000000e+00 : f32
    %109 = vector.broadcast %cst_88 : f32 to vector<16x32xf32>
    %110 = arith.maximumf %108, %109 : vector<16x32xf32>
    %c2 = arith.constant 2 : index
    %c0_89 = arith.constant 0 : index
    %c0_90 = arith.constant 0 : index
    %111 = vector.load %arg4[%c2, %c0_89, %c0_90] : memref<3x32x16xbf16, #tpu.memory_space<vmem>>, vector<1x32x16xbf16>
    %112 = vector.shape_cast %111 : vector<1x32x16xbf16> to vector<32x16xbf16>
    %c2_91 = arith.constant 2 : index
    %c0_92 = arith.constant 0 : index
    %c0_93 = arith.constant 0 : index
    %113 = vector.load %arg5[%c2_91, %c0_92, %c0_93] : memref<3x32x16xbf16, #tpu.memory_space<vmem>>, vector<1x32x16xbf16>
    %114 = vector.shape_cast %113 : vector<1x32x16xbf16> to vector<32x16xbf16>
    %c2_94 = arith.constant 2 : index
    %c0_95 = arith.constant 0 : index
    %c0_96 = arith.constant 0 : index
    %115 = vector.load %arg6[%c2_94, %c0_95, %c0_96] : memref<3x32x16xbf16, #tpu.memory_space<vmem>>, vector<1x32x16xbf16>
    %116 = vector.shape_cast %115 : vector<1x32x16xbf16> to vector<32x16xbf16>
    %c2_97 = arith.constant 2 : index
    %c0_98 = arith.constant 0 : index
    %c0_99 = arith.constant 0 : index
    %117 = vector.load %arg7[%c2_97, %c0_98, %c0_99] : memref<3x16x32xbf16, #tpu.memory_space<vmem>>, vector<1x16x32xbf16>
    %118 = vector.shape_cast %117 : vector<1x16x32xbf16> to vector<16x32xbf16>
    %c2_100 = arith.constant 2 : index
    %c0_101 = arith.constant 0 : index
    %c0_102 = arith.constant 0 : index
    %119 = vector.load %arg8[%c2_100, %c0_101, %c0_102] : memref<3x16x32xbf16, #tpu.memory_space<vmem>>, vector<1x16x32xbf16>
    %120 = vector.shape_cast %119 : vector<1x16x32xbf16> to vector<16x32xbf16>
    %c2_103 = arith.constant 2 : index
    %c0_104 = arith.constant 0 : index
    %c0_105 = arith.constant 0 : index
    %121 = vector.load %arg9[%c2_103, %c0_104, %c0_105] : memref<3x16x32xbf16, #tpu.memory_space<vmem>>, vector<1x16x32xbf16>
    %122 = vector.shape_cast %121 : vector<1x16x32xbf16> to vector<16x32xbf16>
    %c2_106 = arith.constant 2 : index
    %c0_107 = arith.constant 0 : index
    %c0_108 = arith.constant 0 : index
    %123 = vector.load %arg10[%c2_106, %c0_107, %c0_108] : memref<3x1x16xf32, #tpu.memory_space<vmem>>, vector<1x1x16xf32>
    %124 = vector.shape_cast %123 : vector<1x1x16xf32> to vector<1x16xf32>
    %c2_109 = arith.constant 2 : index
    %c0_110 = arith.constant 0 : index
    %c0_111 = arith.constant 0 : index
    %125 = vector.load %arg11[%c2_109, %c0_110, %c0_111] : memref<3x1x16xf32, #tpu.memory_space<vmem>>, vector<1x1x16xf32>
    %126 = vector.shape_cast %125 : vector<1x1x16xf32> to vector<1x16xf32>
    %c2_112 = arith.constant 2 : index
    %c0_113 = arith.constant 0 : index
    %c0_114 = arith.constant 0 : index
    %127 = vector.load %arg12[%c2_112, %c0_113, %c0_114] : memref<3x1x16xf32, #tpu.memory_space<vmem>>, vector<1x1x16xf32>
    %128 = vector.shape_cast %127 : vector<1x1x16xf32> to vector<1x16xf32>
    %c2_115 = arith.constant 2 : index
    %c0_116 = arith.constant 0 : index
    %c0_117 = arith.constant 0 : index
    %129 = vector.load %arg13[%c2_115, %c0_116, %c0_117] : memref<3x1x32xf32, #tpu.memory_space<vmem>>, vector<1x1x32xf32>
    %130 = vector.shape_cast %129 : vector<1x1x32xf32> to vector<1x32xf32>
    %131 = arith.truncf %110 : vector<16x32xf32> to vector<16x32xbf16>
    %cst_118 = arith.constant dense<0.000000e+00> : vector<16x16xf32>
    %132 = tpu.matmul %131, %112, %cst_118 {dimension_numbers = #tpu.dot_dimension_numbers<[1], [0], [0], [1], [0, 0, 1, 1], [], []>} : vector<16x32xbf16>, vector<32x16xbf16>, vector<16x16xf32> -> vector<16x16xf32>
    %133 = vector.broadcast %124 : vector<1x16xf32> to vector<16x16xf32>
    %134 = arith.addf %132, %133 : vector<16x16xf32>
    %cst_119 = arith.constant 0.000000e+00 : f32
    %135 = vector.broadcast %cst_119 : f32 to vector<16x16xf32>
    %136 = arith.maximumf %134, %135 : vector<16x16xf32>
    %cst_120 = arith.constant dense<0.000000e+00> : vector<16x16xf32>
    %137 = tpu.matmul %131, %114, %cst_120 {dimension_numbers = #tpu.dot_dimension_numbers<[1], [0], [0], [1], [0, 0, 1, 1], [], []>} : vector<16x32xbf16>, vector<32x16xbf16>, vector<16x16xf32> -> vector<16x16xf32>
    %cst_121 = arith.constant dense<0.000000e+00> : vector<16x16xf32>
    %138 = tpu.matmul %131, %116, %cst_121 {dimension_numbers = #tpu.dot_dimension_numbers<[1], [0], [0], [1], [0, 0, 1, 1], [], []>} : vector<16x32xbf16>, vector<32x16xbf16>, vector<16x16xf32> -> vector<16x16xf32>
    %139 = arith.truncf %137 : vector<16x16xf32> to vector<16x16xbf16>
    %cst_122 = arith.constant dense<0.000000e+00> : vector<16x16xf32>
    %140 = tpu.matmul %2, %139, %cst_122 {dimension_numbers = #tpu.dot_dimension_numbers<[1], [0], [0], [1], [0, 0, 1, 1], [], []>} : vector<16x16xbf16>, vector<16x16xbf16>, vector<16x16xf32> -> vector<16x16xf32>
    %141 = vector.broadcast %126 : vector<1x16xf32> to vector<16x16xf32>
    %142 = arith.addf %140, %141 : vector<16x16xf32>
    %cst_123 = arith.constant 0.000000e+00 : f32
    %143 = vector.broadcast %cst_123 : f32 to vector<16x16xf32>
    %144 = arith.maximumf %142, %143 : vector<16x16xf32>
    %145 = arith.truncf %138 : vector<16x16xf32> to vector<16x16xbf16>
    %cst_124 = arith.constant dense<0.000000e+00> : vector<16x16xf32>
    %146 = tpu.matmul %4, %145, %cst_124 {dimension_numbers = #tpu.dot_dimension_numbers<[1], [0], [0], [1], [0, 0, 1, 1], [], []>} : vector<16x16xbf16>, vector<16x16xbf16>, vector<16x16xf32> -> vector<16x16xf32>
    %147 = vector.broadcast %128 : vector<1x16xf32> to vector<16x16xf32>
    %148 = arith.addf %146, %147 : vector<16x16xf32>
    %cst_125 = arith.constant 0.000000e+00 : f32
    %149 = vector.broadcast %cst_125 : f32 to vector<16x16xf32>
    %150 = arith.maximumf %148, %149 : vector<16x16xf32>
    %151 = arith.truncf %136 : vector<16x16xf32> to vector<16x16xbf16>
    %cst_126 = arith.constant dense<0.000000e+00> : vector<16x32xf32>
    %152 = tpu.matmul %151, %118, %cst_126 {dimension_numbers = #tpu.dot_dimension_numbers<[1], [0], [0], [1], [0, 0, 1, 1], [], []>} : vector<16x16xbf16>, vector<16x32xbf16>, vector<16x32xf32> -> vector<16x32xf32>
    %153 = arith.truncf %144 : vector<16x16xf32> to vector<16x16xbf16>
    %cst_127 = arith.constant dense<0.000000e+00> : vector<16x32xf32>
    %154 = tpu.matmul %153, %120, %cst_127 {dimension_numbers = #tpu.dot_dimension_numbers<[1], [0], [0], [1], [0, 0, 1, 1], [], []>} : vector<16x16xbf16>, vector<16x32xbf16>, vector<16x32xf32> -> vector<16x32xf32>
    %155 = arith.addf %152, %154 : vector<16x32xf32>
    %156 = arith.truncf %150 : vector<16x16xf32> to vector<16x16xbf16>
    %cst_128 = arith.constant dense<0.000000e+00> : vector<16x32xf32>
    %157 = tpu.matmul %156, %122, %cst_128 {dimension_numbers = #tpu.dot_dimension_numbers<[1], [0], [0], [1], [0, 0, 1, 1], [], []>} : vector<16x16xbf16>, vector<16x32xbf16>, vector<16x32xf32> -> vector<16x32xf32>
    %158 = arith.addf %155, %157 : vector<16x32xf32>
    %159 = vector.broadcast %130 : vector<1x32xf32> to vector<16x32xf32>
    %160 = arith.addf %158, %159 : vector<16x32xf32>
    %161 = arith.addf %160, %110 : vector<16x32xf32>
    %cst_129 = arith.constant 0.000000e+00 : f32
    %162 = vector.broadcast %cst_129 : f32 to vector<16x32xf32>
    %163 = arith.maximumf %161, %162 : vector<16x32xf32>
    %c0_130 = arith.constant 0 : index
    %c0_131 = arith.constant 0 : index
    %164 = vector.load %arg14[%c0_130, %c0_131] : memref<16x32xf32, #tpu.memory_space<vmem>>, vector<16x32xf32>
    tpu.vector_store %arg14[%c0_130, %c0_131], %163 {strides = array<i32>} : memref<16x32xf32, #tpu.memory_space<vmem>>, vector<16x32xf32>,
    return
  }
  func.func @transform_0(%arg0: i32) -> (i32, i32) {
    %c0_i32 = arith.constant 0 : i32
    %c0_i32_0 = arith.constant 0 : i32
    return %arg0, %c0_i32 : i32, i32
  }
  func.func @transform_1(%arg0: i32) -> (i32, i32, i32) {
    %c0_i32 = arith.constant 0 : i32
    %c0_i32_0 = arith.constant 0 : i32
    %c0_i32_1 = arith.constant 0 : i32
    return %arg0, %c0_i32, %c0_i32_0 : i32, i32, i32
  }
  func.func @transform_2(%arg0: i32) -> (i32, i32, i32) {
    %c0_i32 = arith.constant 0 : i32
    %c0_i32_0 = arith.constant 0 : i32
    %c0_i32_1 = arith.constant 0 : i32
    return %arg0, %c0_i32, %c0_i32_0 : i32, i32, i32
  }
  func.func @transform_3(%arg0: i32) -> (i32, i32, i32) {
    %c0_i32 = arith.constant 0 : i32
    %c0_i32_0 = arith.constant 0 : i32
    %c0_i32_1 = arith.constant 0 : i32
    %c0_i32_2 = arith.constant 0 : i32
    return %c0_i32, %c0_i32_0, %c0_i32_1 : i32, i32, i32
  }
  func.func @transform_4(%arg0: i32) -> (i32, i32, i32) {
    %c0_i32 = arith.constant 0 : i32
    %c0_i32_0 = arith.constant 0 : i32
    %c0_i32_1 = arith.constant 0 : i32
    %c0_i32_2 = arith.constant 0 : i32
    return %c0_i32, %c0_i32_0, %c0_i32_1 : i32, i32, i32
  }
  func.func @transform_5(%arg0: i32) -> (i32, i32, i32) {
    %c0_i32 = arith.constant 0 : i32
    %c0_i32_0 = arith.constant 0 : i32
    %c0_i32_1 = arith.constant 0 : i32
    %c0_i32_2 = arith.constant 0 : i32
    return %c0_i32, %c0_i32_0, %c0_i32_1 : i32, i32, i32
  }
  func.func @transform_6(%arg0: i32) -> (i32, i32, i32) {
    %c0_i32 = arith.constant 0 : i32
    %c0_i32_0 = arith.constant 0 : i32
    %c0_i32_1 = arith.constant 0 : i32
    %c0_i32_2 = arith.constant 0 : i32
    return %c0_i32, %c0_i32_0, %c0_i32_1 : i32, i32, i32
  }
  func.func @transform_7(%arg0: i32) -> (i32, i32, i32) {
    %c0_i32 = arith.constant 0 : i32
    %c0_i32_0 = arith.constant 0 : i32
    %c0_i32_1 = arith.constant 0 : i32
    %c0_i32_2 = arith.constant 0 : i32
    return %c0_i32, %c0_i32_0, %c0_i32_1 : i32, i32, i32
  }
  func.func @transform_8(%arg0: i32) -> (i32, i32, i32) {
    %c0_i32 = arith.constant 0 : i32
    %c0_i32_0 = arith.constant 0 : i32
    %c0_i32_1 = arith.constant 0 : i32
    %c0_i32_2 = arith.constant 0 : i32
    return %c0_i32, %c0_i32_0, %c0_i32_1 : i32, i32, i32
  }
  func.func @transform_9(%arg0: i32) -> (i32, i32, i32) {
    %c0_i32 = arith.constant 0 : i32
    %c0_i32_0 = arith.constant 0 : i32
    %c0_i32_1 = arith.constant 0 : i32
    %c0_i32_2 = arith.constant 0 : i32
    return %c0_i32, %c0_i32_0, %c0_i32_1 : i32, i32, i32
  }
  func.func @transform_10(%arg0: i32) -> (i32, i32, i32) {
    %c0_i32 = arith.constant 0 : i32
    %c0_i32_0 = arith.constant 0 : i32
    %c0_i32_1 = arith.constant 0 : i32
    %c0_i32_2 = arith.constant 0 : i32
    return %c0_i32, %c0_i32_0, %c0_i32_1 : i32, i32, i32
  }
  func.func @transform_11(%arg0: i32) -> (i32, i32, i32) {
    %c0_i32 = arith.constant 0 : i32
    %c0_i32_0 = arith.constant 0 : i32
    %c0_i32_1 = arith.constant 0 : i32
    %c0_i32_2 = arith.constant 0 : i32
    return %c0_i32, %c0_i32_0, %c0_i32_1 : i32, i32, i32
  }
  func.func @transform_12(%arg0: i32) -> (i32, i32, i32) {
    %c0_i32 = arith.constant 0 : i32
    %c0_i32_0 = arith.constant 0 : i32
    %c0_i32_1 = arith.constant 0 : i32
    %c0_i32_2 = arith.constant 0 : i32
    return %c0_i32, %c0_i32_0, %c0_i32_1 : i32, i32, i32
  }
  func.func @transform_13(%arg0: i32) -> (i32, i32) {
    %c0_i32 = arith.constant 0 : i32
    %c0_i32_0 = arith.constant 0 : i32
    return %arg0, %c0_i32 : i32, i32
  }
}

</mosaic_0001>

<llo_original>
// kernel: gcn_forward.1
$region0: #{gcn_forward.1}
  #allocation0 [shape = 'u32[]', space=smem, size = 0x4, offset = 0x4, fixed_abs, tag = 'smem constant byte address 0x4 - core index']
  #allocation1 [shape = 'u32[144,128]{1,0:T(1,128)}', space=vmem, size = 0x12000, scoped, tag = 'internal scratch']
  %s0 = inlined_call_operand.vmem [shape: f32[32,32], index: 0, kind: input, shape index: {}]
  %s1 = inlined_call_operand.vmem [shape: bf16[2,16,16], index: 1, kind: input, shape index: {}]
  %s2 = inlined_call_operand.vmem [shape: bf16[2,16,16], index: 2, kind: input, shape index: {}]
  %s3 = inlined_call_operand.vmem [shape: bf16[3,32,16], index: 3, kind: input, shape index: {}]
  %s4 = inlined_call_operand.vmem [shape: bf16[3,32,16], index: 4, kind: input, shape index: {}]
  %s5 = inlined_call_operand.vmem [shape: bf16[3,32,16], index: 5, kind: input, shape index: {}]
  %s6 = inlined_call_operand.vmem [shape: bf16[3,16,32], index: 6, kind: input, shape index: {}]
  %s7 = inlined_call_operand.vmem [shape: bf16[3,16,32], index: 7, kind: input, shape index: {}]
  %s8 = inlined_call_operand.vmem [shape: bf16[3,16,32], index: 8, kind: input, shape index: {}]
  %s9 = inlined_call_operand.vmem [shape: f32[3,1,16], index: 9, kind: input, shape index: {}]
  %s10 = inlined_call_operand.vmem [shape: f32[3,1,16], index: 10, kind: input, shape index: {}]
  %s11 = inlined_call_operand.vmem [shape: f32[3,1,16], index: 11, kind: input, shape index: {}]
  %s12 = inlined_call_operand.vmem [shape: f32[3,1,32], index: 12, kind: input, shape index: {}]
  %s13 = inlined_call_operand.hbm [shape: f32[32,32], index: 13, kind: output, shape index: {}]
  %s14 = sld [smem:[#allocation0]]
  $region85: #{gcn_forward.1} parent=0
    _
  %s16 = ssub.s32 1, %s14
  %s17 = scalar_select 0, %s16, %s14
  $region1: #{gcn_forward.1} parent=0
    #allocation2 [shape = 'u8[16384]{0}', space=vmem, size = 0x4000, scoped, tag = 'output window, operand 0']
    #allocation3 [shape = 's32[2]{0}', space=sflag, size = 0x8, scoped, tag = 'scoped memory for gcn_forward.1']
    %18 = vsyncpa [#allocation3], 0
    %s19 = scalar_lea.sflag [#allocation3], 1
    %20 = vsyncpa %s19, 0
    loop: start=0, step=1, limit=4
    $region2: #{gcn_forward.1} parent=1 // loop_pre_header
      _
    $region3: #{gcn_forward.1} parent=1 // loop_header
      %s22 = sphi 0, %s26
      %p23 = scmp.ge.s32.totalorder %s22, 4
      %s32 = sphi 0, %s34
      %s35 = sphi 0, %s32
      %s36 = sphi 0, %s35
      %s52 = sphi 0, %s36
      %s58 = sphi 0, %s60
      %s61 = sphi 0, %s58
      %s62 = sphi 0, %s61
      %s78 = sphi 0, %s62
      %s84 = sphi 0, %s86
      %s87 = sphi 0, %s84
      %s88 = sphi 0, %s87
      %s104 = sphi 0, %s88
      %s108 = sphi 0, %s108
      %s110 = sphi 0, %s108
      %s111 = sphi 0, %s110
      %s125 = sphi 0, %s111
      %s129 = sphi 0, %s129
      %s131 = sphi 0, %s129
      %s132 = sphi 0, %s131
      %s146 = sphi 0, %s132
      %s150 = sphi 0, %s150
      %s152 = sphi 0, %s150
      %s153 = sphi 0, %s152
      %s167 = sphi 0, %s153
      %s171 = sphi 0, %s171
      %s173 = sphi 0, %s171
      %s174 = sphi 0, %s173
      %s188 = sphi 0, %s174
      %s192 = sphi 0, %s192
      %s194 = sphi 0, %s192
      %s195 = sphi 0, %s194
      %s209 = sphi 0, %s195
      %s213 = sphi 0, %s213
      %s215 = sphi 0, %s213
      %s216 = sphi 0, %s215
      %s230 = sphi 0, %s216
      %s234 = sphi 0, %s234
      %s236 = sphi 0, %s234
      %s237 = sphi 0, %s236
      %s251 = sphi 0, %s237
      %s255 = sphi 0, %s255
      %s257 = sphi 0, %s255
      %s258 = sphi 0, %s257
      %s272 = sphi 0, %s258
      %s276 = sphi 0, %s276
      %s278 = sphi 0, %s276
      %s279 = sphi 0, %s278
      %s293 = sphi 0, %s279
      %s297 = sphi 0, %s297
      %s299 = sphi 0, %s297
      %s300 = sphi 0, %s299
      %s314 = sphi 0, %s300
      %s320 = sphi 0, %s322
      %s323 = sphi 0, %s320
      %s324 = sphi 0, %s323
      %s340 = sphi 0, %s324
    $region4: #{gcn_forward.1} parent=1 // loop_header_branch
      %25 = sbr.rel (%p23) target = $region8
    $region5: #{gcn_forward.1} parent=1 // loop_body
      %s27 = ssub.s32 %s22, 1
      %s28 = ssub.s32 %s22, 2
      %s29 = sadd.s32 %s22, 1
      %s30 = ssub.s32 %s22, %s29
      %p31 = scmp.eq.s32.totalorder %s30, 0
      %s33 = sadd.s32 %s32, 1
      %s34 = scalar_select %p31, %s32, %s33
      %p37 = pneg %p31
      %p38 = scmp.eq.s32.totalorder %s22, 1
      %p39 = por %p37, %p38
      %p40 = scmp.ne.s32.totalorder %s32, %s35
      %p41 = scmp.eq.s32.totalorder %s22, 0
      %p42 = por %p40, %p41
      %p43 = scmp.ne.s32.totalorder %s32, %s35
      %p44 = scmp.eq.s32.totalorder %s27, 1
      %p45 = por %p43, %p44
      %p46 = scmp.ne.s32.totalorder %s35, %s36
      %p47 = scmp.eq.s32.totalorder %s27, 0
      %p48 = por %p46, %p47
      %p49 = scmp.ne.s32.totalorder %s35, %s36
      %p50 = scmp.eq.s32.totalorder %s28, 1
      %p51 = por %p49, %p50
      %p53 = scmp.ne.s32.totalorder %s36, %s52
      %p54 = scmp.eq.s32.totalorder %s28, 0
      %p55 = por %p53, %p54
      %s56 = ssub.s32 %s22, %s29
      %p57 = scmp.eq.s32.totalorder %s56, 0
      %s59 = sadd.s32 %s58, 1
      %s60 = scalar_select %p57, %s58, %s59
      %p63 = pneg %p57
      %p64 = scmp.eq.s32.totalorder %s22, 1
      %p65 = por %p63, %p64
      %p66 = scmp.ne.s32.totalorder %s58, %s61
      %p67 = scmp.eq.s32.totalorder %s22, 0
      %p68 = por %p66, %p67
      %p69 = scmp.ne.s32.totalorder %s58, %s61
      %p70 = scmp.eq.s32.totalorder %s27, 1
      %p71 = por %p69, %p70
      %p72 = scmp.ne.s32.totalorder %s61, %s62
      %p73 = scmp.eq.s32.totalorder %s27, 0
      %p74 = por %p72, %p73
      %p75 = scmp.ne.s32.totalorder %s61, %s62
      %p76 = scmp.eq.s32.totalorder %s28, 1
      %p77 = por %p75, %p76
      %p79 = scmp.ne.s32.totalorder %s62, %s78
      %p80 = scmp.eq.s32.totalorder %s28, 0
      %p81 = por %p79, %p80
      %s82 = ssub.s32 %s22, %s29
      %p83 = scmp.eq.s32.totalorder %s82, 0
      %s85 = sadd.s32 %s84, 1
      %s86 = scalar_select %p83, %s84, %s85
      %p89 = pneg %p83
      %p90 = scmp.eq.s32.totalorder %s22, 1
      %p91 = por %p89, %p90
      %p92 = scmp.ne.s32.totalorder %s84, %s87
      %p93 = scmp.eq.s32.totalorder %s22, 0
      %p94 = por %p92, %p93
      %p95 = scmp.ne.s32.totalorder %s84, %s87
      %p96 = scmp.eq.s32.totalorder %s27, 1
      %p97 = por %p95, %p96
      %p98 = scmp.ne.s32.totalorder %s87, %s88
      %p99 = scmp.eq.s32.totalorder %s27, 0
      %p100 = por %p98, %p99
      %p101 = scmp.ne.s32.totalorder %s87, %s88
      %p102 = scmp.eq.s32.totalorder %s28, 1
      %p103 = por %p101, %p102
      %p105 = scmp.ne.s32.totalorder %s88, %s104
      %p106 = scmp.eq.s32.totalorder %s28, 0
      %p107 = por %p105, %p106
      %s109 = sadd.s32 %s108, 1
      %p112 = scmp.eq.s32.totalorder %s22, 1
      %p113 = scmp.ne.s32.totalorder %s108, %s110
      %p114 = scmp.eq.s32.totalorder %s22, 0
      %p115 = por %p113, %p114
      %p116 = scmp.ne.s32.totalorder %s108, %s110
      %p117 = scmp.eq.s32.totalorder %s27, 1
      %p118 = por %p116, %p117
      %p119 = scmp.ne.s32.totalorder %s110, %s111
      %p120 = scmp.eq.s32.totalorder %s27, 0
      %p121 = por %p119, %p120
      %p122 = scmp.ne.s32.totalorder %s110, %s111
      %p123 = scmp.eq.s32.totalorder %s28, 1
      %p124 = por %p122, %p123
      %p126 = scmp.ne.s32.totalorder %s111, %s125
      %p127 = scmp.eq.s32.totalorder %s28, 0
      %p128 = por %p126, %p127
      %s130 = sadd.s32 %s129, 1
      %p133 = scmp.eq.s32.totalorder %s22, 1
      %p134 = scmp.ne.s32.totalorder %s129, %s131
      %p135 = scmp.eq.s32.totalorder %s22, 0
      %p136 = por %p134, %p135
      %p137 = scmp.ne.s32.totalorder %s129, %s131
      %p138 = scmp.eq.s32.totalorder %s27, 1
      %p139 = por %p137, %p138
      %p140 = scmp.ne.s32.totalorder %s131, %s132
      %p141 = scmp.eq.s32.totalorder %s27, 0
      %p142 = por %p140, %p141
      %p143 = scmp.ne.s32.totalorder %s131, %s132
      %p144 = scmp.eq.s32.totalorder %s28, 1
      %p145 = por %p143, %p144
      %p147 = scmp.ne.s32.totalorder %s132, %s146
      %p148 = scmp.eq.s32.totalorder %s28, 0
      %p149 = por %p147, %p148
      %s151 = sadd.s32 %s150, 1
      %p154 = scmp.eq.s32.totalorder %s22, 1
      %p155 = scmp.ne.s32.totalorder %s150, %s152
      %p156 = scmp.eq.s32.totalorder %s22, 0
      %p157 = por %p155, %p156
      %p158 = scmp.ne.s32.totalorder %s150, %s152
      %p159 = scmp.eq.s32.totalorder %s27, 1
      %p160 = por %p158, %p159
      %p161 = scmp.ne.s32.totalorder %s152, %s153
      %p162 = scmp.eq.s32.totalorder %s27, 0
      %p163 = por %p161, %p162
      %p164 = scmp.ne.s32.totalorder %s152, %s153
      %p165 = scmp.eq.s32.totalorder %s28, 1
      %p166 = por %p164, %p165
      %p168 = scmp.ne.s32.totalorder %s153, %s167
      %p169 = scmp.eq.s32.totalorder %s28, 0
      %p170 = por %p168, %p169
      %s172 = sadd.s32 %s171, 1
      %p175 = scmp.eq.s32.totalorder %s22, 1
      %p176 = scmp.ne.s32.totalorder %s171, %s173
      %p177 = scmp.eq.s32.totalorder %s22, 0
      %p178 = por %p176, %p177
      %p179 = scmp.ne.s32.totalorder %s171, %s173
      %p180 = scmp.eq.s32.totalorder %s27, 1
      %p181 = por %p179, %p180
      %p182 = scmp.ne.s32.totalorder %s173, %s174
      %p183 = scmp.eq.s32.totalorder %s27, 0
      %p184 = por %p182, %p183
      %p185 = scmp.ne.s32.totalorder %s173, %s174
      %p186 = scmp.eq.s32.totalorder %s28, 1
      %p187 = por %p185, %p186
      %p189 = scmp.ne.s32.totalorder %s174, %s188
      %p190 = scmp.eq.s32.totalorder %s28, 0
      %p191 = por %p189, %p190
      %s193 = sadd.s32 %s192, 1
      %p196 = scmp.eq.s32.totalorder %s22, 1
      %p197 = scmp.ne.s32.totalorder %s192, %s194
      %p198 = scmp.eq.s32.totalorder %s22, 0
      %p199 = por %p197, %p198
      %p200 = scmp.ne.s32.totalorder %s192, %s194
      %p201 = scmp.eq.s32.totalorder %s27, 1
      %p202 = por %p200, %p201
      %p203 = scmp.ne.s32.totalorder %s194, %s195
      %p204 = scmp.eq.s32.totalorder %s27, 0
      %p205 = por %p203, %p204
      %p206 = scmp.ne.s32.totalorder %s194, %s195
      %p207 = scmp.eq.s32.totalorder %s28, 1
      %p208 = por %p206, %p207
      %p210 = scmp.ne.s32.totalorder %s195, %s209
      %p211 = scmp.eq.s32.totalorder %s28, 0
      %p212 = por %p210, %p211
      %s214 = sadd.s32 %s213, 1
      %p217 = scmp.eq.s32.totalorder %s22, 1
      %p218 = scmp.ne.s32.totalorder %s213, %s215
      %p219 = scmp.eq.s32.totalorder %s22, 0
      %p220 = por %p218, %p219
      %p221 = scmp.ne.s32.totalorder %s213, %s215
      %p222 = scmp.eq.s32.totalorder %s27, 1
      %p223 = por %p221, %p222
      %p224 = scmp.ne.s32.totalorder %s215, %s216
      %p225 = scmp.eq.s32.totalorder %s27, 0
      %p226 = por %p224, %p225
      %p227 = scmp.ne.s32.totalorder %s215, %s216
      %p228 = scmp.eq.s32.totalorder %s28, 1
      %p229 = por %p227, %p228
      %p231 = scmp.ne.s32.totalorder %s216, %s230
      %p232 = scmp.eq.s32.totalorder %s28, 0
      %p233 = por %p231, %p232
      %s235 = sadd.s32 %s234, 1
      %p238 = scmp.eq.s32.totalorder %s22, 1
      %p239 = scmp.ne.s32.totalorder %s234, %s236
      %p240 = scmp.eq.s32.totalorder %s22, 0
      %p241 = por %p239, %p240
      %p242 = scmp.ne.s32.totalorder %s234, %s236
      %p243 = scmp.eq.s32.totalorder %s27, 1
      %p244 = por %p242, %p243
      %p245 = scmp.ne.s32.totalorder %s236, %s237
      %p246 = scmp.eq.s32.totalorder %s27, 0
      %p247 = por %p245, %p246
      %p248 = scmp.ne.s32.totalorder %s236, %s237
      %p249 = scmp.eq.s32.totalorder %s28, 1
      %p250 = por %p248, %p249
      %p252 = scmp.ne.s32.totalorder %s237, %s251
      %p253 = scmp.eq.s32.totalorder %s28, 0
      %p254 = por %p252, %p253
      %s256 = sadd.s32 %s255, 1
      %p259 = scmp.eq.s32.totalorder %s22, 1
      %p260 = scmp.ne.s32.totalorder %s255, %s257
      %p261 = scmp.eq.s32.totalorder %s22, 0
      %p262 = por %p260, %p261
      %p263 = scmp.ne.s32.totalorder %s255, %s257
      %p264 = scmp.eq.s32.totalorder %s27, 1
      %p265 = por %p263, %p264
      %p266 = scmp.ne.s32.totalorder %s257, %s258
      %p267 = scmp.eq.s32.totalorder %s27, 0
      %p268 = por %p266, %p267
      %p269 = scmp.ne.s32.totalorder %s257, %s258
      %p270 = scmp.eq.s32.totalorder %s28, 1
      %p271 = por %p269, %p270
      %p273 = scmp.ne.s32.totalorder %s258, %s272
      %p274 = scmp.eq.s32.totalorder %s28, 0
      %p275 = por %p273, %p274
      %s277 = sadd.s32 %s276, 1
      %p280 = scmp.eq.s32.totalorder %s22, 1
      %p281 = scmp.ne.s32.totalorder %s276, %s278
      %p282 = scmp.eq.s32.totalorder %s22, 0
      %p283 = por %p281, %p282
      %p284 = scmp.ne.s32.totalorder %s276, %s278
      %p285 = scmp.eq.s32.totalorder %s27, 1
      %p286 = por %p284, %p285
      %p287 = scmp.ne.s32.totalorder %s278, %s279
      %p288 = scmp.eq.s32.totalorder %s27, 0
      %p289 = por %p287, %p288
      %p290 = scmp.ne.s32.totalorder %s278, %s279
      %p291 = scmp.eq.s32.totalorder %s28, 1
      %p292 = por %p290, %p291
      %p294 = scmp.ne.s32.totalorder %s279, %s293
      %p295 = scmp.eq.s32.totalorder %s28, 0
      %p296 = por %p294, %p295
      %s298 = sadd.s32 %s297, 1
      %p301 = scmp.eq.s32.totalorder %s22, 1
      %p302 = scmp.ne.s32.totalorder %s297, %s299
      %p303 = scmp.eq.s32.totalorder %s22, 0
      %p304 = por %p302, %p303
      %p305 = scmp.ne.s32.totalorder %s297, %s299
      %p306 = scmp.eq.s32.totalorder %s27, 1
      %p307 = por %p305, %p306
      %p308 = scmp.ne.s32.totalorder %s299, %s300
      %p309 = scmp.eq.s32.totalorder %s27, 0
      %p310 = por %p308, %p309
      %p311 = scmp.ne.s32.totalorder %s299, %s300
      %p312 = scmp.eq.s32.totalorder %s28, 1
      %p313 = por %p311, %p312
      %p315 = scmp.ne.s32.totalorder %s300, %s314
      %p316 = scmp.eq.s32.totalorder %s28, 0
      %p317 = por %p315, %p316
      %s318 = ssub.s32 %s22, %s29
      %p319 = scmp.eq.s32.totalorder %s318, 0
      %s321 = sadd.s32 %s320, 1
      %s322 = scalar_select %p319, %s320, %s321
      %p325 = pneg %p319
      %p326 = scmp.eq.s32.totalorder %s22, 1
      %p327 = por %p325, %p326
      %p328 = scmp.ne.s32.totalorder %s320, %s323
      %p329 = scmp.eq.s32.totalorder %s22, 0
      %p330 = por %p328, %p329
      %p331 = scmp.ne.s32.totalorder %s320, %s323
      %p332 = scmp.eq.s32.totalorder %s27, 1
      %p333 = por %p331, %p332
      %p334 = scmp.ne.s32.totalorder %s323, %s324
      %p335 = scmp.eq.s32.totalorder %s27, 0
      %p336 = por %p334, %p335
      %p337 = scmp.ne.s32.totalorder %s323, %s324
      %p338 = scmp.eq.s32.totalorder %s28, 1
      %p339 = por %p337, %p338
      %p341 = scmp.ne.s32.totalorder %s324, %s340
      %p342 = scmp.eq.s32.totalorder %s28, 0
      %p343 = por %p341, %p342
      %p344 = scmp.le.s32.totalorder 1, %s22
      %p345 = scmp.lt.s32.totalorder %s22, 3
      %p346 = pnand %p344, %p345
      %p347 = pneg %p346
      // Predicated region
      $region9: #{gcn_forward.1} parent=5 // pred_check
        _
      $region10: #{gcn_forward.1} parent=5 // pred_check_branch
        %349 = sbr.rel (%p346) target = $region12
      $region11: #{gcn_forward.1} parent=5 // pred_region
        %s350 = ssub.s32 %s22, 1
        // Predicated region
        $region13: #{gcn_forward.1} parent=11 // pred_check
          %p351 = pneg %p121
        $region14: #{gcn_forward.1} parent=11 // pred_check_branch
          %353 = sbr.rel (%p351) target = $region16
        $region15: #{gcn_forward.1} parent=11 // pred_region
          _
        $region16: #{gcn_forward.1} parent=11 // pred_fallthru
          _
        // Predicated region
        $region17: #{gcn_forward.1} parent=11 // pred_check
          %p354 = pneg %p142
        $region18: #{gcn_forward.1} parent=11 // pred_check_branch
          %356 = sbr.rel (%p354) target = $region20
        $region19: #{gcn_forward.1} parent=11 // pred_region
          _
        $region20: #{gcn_forward.1} parent=11 // pred_fallthru
          _
        // Predicated region
        $region21: #{gcn_forward.1} parent=11 // pred_check
          %p357 = pneg %p163
        $region22: #{gcn_forward.1} parent=11 // pred_check_branch
          %359 = sbr.rel (%p357) target = $region24
        $region23: #{gcn_forward.1} parent=11 // pred_region
          _
        $region24: #{gcn_forward.1} parent=11 // pred_fallthru
          _
        // Predicated region
        $region25: #{gcn_forward.1} parent=11 // pred_check
          %p360 = pneg %p184
        $region26: #{gcn_forward.1} parent=11 // pred_check_branch
          %362 = sbr.rel (%p360) target = $region28
        $region27: #{gcn_forward.1} parent=11 // pred_region
          _
        $region28: #{gcn_forward.1} parent=11 // pred_fallthru
          _
        // Predicated region
        $region29: #{gcn_forward.1} parent=11 // pred_check
          %p363 = pneg %p205
        $region30: #{gcn_forward.1} parent=11 // pred_check_branch
          %365 = sbr.rel (%p363) target = $region32
        $region31: #{gcn_forward.1} parent=11 // pred_region
          _
        $region32: #{gcn_forward.1} parent=11 // pred_fallthru
          _
        // Predicated region
        $region33: #{gcn_forward.1} parent=11 // pred_check
          %p366 = pneg %p226
        $region34: #{gcn_forward.1} parent=11 // pred_check_branch
          %368 = sbr.rel (%p366) target = $region36
        $region35: #{gcn_forward.1} parent=11 // pred_region
          _
        $region36: #{gcn_forward.1} parent=11 // pred_fallthru
          _
        // Predicated region
        $region37: #{gcn_forward.1} parent=11 // pred_check
          %p369 = pneg %p247
        $region38: #{gcn_forward.1} parent=11 // pred_check_branch
          %371 = sbr.rel (%p369) target = $region40
        $region39: #{gcn_forward.1} parent=11 // pred_region
          _
        $region40: #{gcn_forward.1} parent=11 // pred_fallthru
          _
        // Predicated region
        $region41: #{gcn_forward.1} parent=11 // pred_check
          %p372 = pneg %p268
        $region42: #{gcn_forward.1} parent=11 // pred_check_branch
          %374 = sbr.rel (%p372) target = $region44
        $region43: #{gcn_forward.1} parent=11 // pred_region
          _
        $region44: #{gcn_forward.1} parent=11 // pred_fallthru
          _
        // Predicated region
        $region45: #{gcn_forward.1} parent=11 // pred_check
          %p375 = pneg %p289
        $region46: #{gcn_forward.1} parent=11 // pred_check_branch
          %377 = sbr.rel (%p375) target = $region48
        $region47: #{gcn_forward.1} parent=11 // pred_region
          _
        $region48: #{gcn_forward.1} parent=11 // pred_fallthru
          _
        // Predicated region
        $region49: #{gcn_forward.1} parent=11 // pred_check
          %p378 = pneg %p310
        $region50: #{gcn_forward.1} parent=11 // pred_check_branch
          %380 = sbr.rel (%p378) target = $region52
        $region51: #{gcn_forward.1} parent=11 // pred_region
          _
        $region52: #{gcn_forward.1} parent=11 // pred_fallthru
          _
      $region12: #{gcn_forward.1} parent=5 // pred_fallthru
        _
      %p381 = scmp.lt.s32.totalorder %s22, 2
      // Predicated region
      $region53: #{gcn_forward.1} parent=5 // pred_check
        %p382 = pneg %p381
      $region54: #{gcn_forward.1} parent=5 // pred_check_branch
        %384 = sbr.rel (%p382) target = $region56
      $region55: #{gcn_forward.1} parent=5 // pred_region
        // Predicated region
        $region57: #{gcn_forward.1} parent=55 // pred_check
          %p385 = pneg %p42
        $region58: #{gcn_forward.1} parent=55 // pred_check_branch
          %387 = sbr.rel (%p385) target = $region60
        $region59: #{gcn_forward.1} parent=55 // pred_region
          %s388 = smul.u32 2, %s22
          %p389 = scmp.lt.s32.totalorder %s388, 3
          %s390 = scalar_select %p389, %s388, 3
          %s391 = smul.addr %s390, 8
          %s392 = scalar_lea.vmem %s0, %s391
          %s393 = smul.u32 2, %s22
        $region60: #{gcn_forward.1} parent=55 // pred_fallthru
          _
        // Predicated region
        $region61: #{gcn_forward.1} parent=55 // pred_check
          %p394 = pneg %p68
        $region62: #{gcn_forward.1} parent=55 // pred_check_branch
          %396 = sbr.rel (%p394) target = $region64
        $region63: #{gcn_forward.1} parent=55 // pred_region
          %p397 = scmp.lt.s32.totalorder %s22, 1
          %s398 = scalar_select %p397, %s22, 1
          %s399 = smul.addr %s398, 2
          %s400 = smul.addr %s399, 4
          %s401 = scalar_lea.vmem %s1, %s400
        $region64: #{gcn_forward.1} parent=55 // pred_fallthru
          _
        // Predicated region
        $region65: #{gcn_forward.1} parent=55 // pred_check
          %p402 = pneg %p94
        $region66: #{gcn_forward.1} parent=55 // pred_check_branch
          %404 = sbr.rel (%p402) target = $region68
        $region67: #{gcn_forward.1} parent=55 // pred_region
          %p405 = scmp.lt.s32.totalorder %s22, 1
          %s406 = scalar_select %p405, %s22, 1
          %s407 = smul.addr %s406, 2
          %s408 = smul.addr %s407, 4
          %s409 = scalar_lea.vmem %s2, %s408
        $region68: #{gcn_forward.1} parent=55 // pred_fallthru
          _
      $region56: #{gcn_forward.1} parent=5 // pred_fallthru
        _
      %p410 = scmp.le.s32.totalorder 1, %s22
      %p411 = scmp.lt.s32.totalorder %s22, 3
      %p412 = pnand %p410, %p411
      %p413 = pneg %p412
      // Predicated region
      $region69: #{gcn_forward.1} parent=5 // pred_check
        _
      $region70: #{gcn_forward.1} parent=5 // pred_check_branch
        %415 = sbr.rel (%p412) target = $region72
      $region71: #{gcn_forward.1} parent=5 // pred_region
        %s416 = ssub.s32 %s22, 1
        %s417 = smul.u32 2, %s27
        %p418 = scmp.lt.s32.totalorder %s417, 3
        %s419 = scalar_select %p418, %s417, 3
        %s420 = smul.addr %s419, 8
        %s421 = scalar_lea.vmem %s0, %s420
        %p422 = pneg %p48
        %p423 = pneg %p45
        %p424 = scmp.lt.s32.totalorder %s27, 1
        %s425 = scalar_select %p424, %s27, 1
        %s426 = smul.addr %s425, 2
        %s427 = smul.addr %s426, 4
        %s428 = scalar_lea.vmem %s1, %s427
        %p429 = pneg %p74
        %p430 = pneg %p71
        %p431 = scmp.lt.s32.totalorder %s27, 1
        %s432 = scalar_select %p431, %s27, 1
        %s433 = smul.addr %s432, 2
        %s434 = smul.addr %s433, 4
        %s435 = scalar_lea.vmem %s2, %s434
        %p436 = pneg %p100
        %p437 = pneg %p97
        %p438 = pneg %p121
        %p439 = pneg %p118
        %p440 = pneg %p142
        %p441 = pneg %p139
        %p442 = pneg %p163
        %p443 = pneg %p160
        %p444 = pneg %p184
        %p445 = pneg %p181
        %p446 = pneg %p205
        %p447 = pneg %p202
        %p448 = pneg %p226
        %p449 = pneg %p223
        %p450 = pneg %p247
        %p451 = pneg %p244
        %p452 = pneg %p268
        %p453 = pneg %p265
        %p454 = pneg %p289
        %p455 = pneg %p286
        %p456 = pneg %p310
        %p457 = pneg %p307
        %p458 = pneg %p336
        %p459 = pneg %p333
        %s460 = sand.u32 %s323, 1
        %s461 = scalar_lea.sflag [#allocation3], %s460
        %s462 = sand.u32 %s323, 1
        %s463 = smul.addr %s462, 16
        %s464 = scalar_lea.vmem [#allocation2], %s463
        %s465 = smul.u32 2, %s27
        %p466 = scmp.lt.s32.totalorder %s465, 3
        %s467 = scalar_select %p466, %s465, 3
        %s468 = smul.addr %s467, 8
        %s469 = scalar_lea.vmem %s0, %s468
        %s470 = smul.u32 2, %s27
        %p471 = scmp.lt.s32.totalorder %s27, 1
        %s472 = scalar_select %p471, %s27, 1
        %s473 = smul.addr %s472, 2
        %s474 = smul.addr %s473, 4
        %s475 = scalar_lea.vmem %s1, %s474
        %p476 = scmp.lt.s32.totalorder %s27, 1
        %s477 = scalar_select %p476, %s27, 1
        %s478 = smul.addr %s477, 2
        %s479 = smul.addr %s478, 4
        %s480 = scalar_lea.vmem %s2, %s479
        %s481 = smul.u32 2, %s27
        %v483 = vld [vmem:[%s469] sm:$0xff]
        %v484 = vld [vmem:[%s469 + $0x8] sm:$0xff]
        %v485 = vld [vmem:[%s475] sm:$0xf]
        %v486 = vld [vmem:[%s475 + $0x4] sm:$0xf]
        %v487 = vld [vmem:[%s480] sm:$0xf]
        %v488 = vld [vmem:[%s480 + $0x4] sm:$0xf]
        %v489 = vld [vmem:[%s3] sm:$0xf]
        %v490 = vld [vmem:[%s3 + $0x4] sm:$0xf]
        %v491 = vld [vmem:[%s3 + $0x8] sm:$0xf]
        %v492 = vld [vmem:[%s3 + $0xc] sm:$0xf]
        %v493 = vld [vmem:[%s4] sm:$0xf]
        %v494 = vld [vmem:[%s4 + $0x4] sm:$0xf]
        %v495 = vld [vmem:[%s4 + $0x8] sm:$0xf]
        %v496 = vld [vmem:[%s4 + $0xc] sm:$0xf]
        %v497 = vld [vmem:[%s5] sm:$0xf]
        %v498 = vld [vmem:[%s5 + $0x4] sm:$0xf]
        %v499 = vld [vmem:[%s5 + $0x8] sm:$0xf]
        %v500 = vld [vmem:[%s5 + $0xc] sm:$0xf]
        %v501 = vld [vmem:[%s6] sm:$0xf]
        %v502 = vld [vmem:[%s6 + $0x4] sm:$0xf]
        %v503 = vld [vmem:[%s7] sm:$0xf]
        %v504 = vld [vmem:[%s7 + $0x4] sm:$0xf]
        %v505 = vld [vmem:[%s8] sm:$0xf]
        %v506 = vld [vmem:[%s8 + $0x4] sm:$0xf]
        %v507 = vld [vmem:[%s9] sm:$0x1]
        %v508 = vld [vmem:[%s10] sm:$0x1]
        %v509 = vld [vmem:[%s11] sm:$0x1]
        %v510 = vld [vmem:[%s12] sm:$0x1]
        %v511 = vpack.c.bf16 %v484, %v483
        %v513 = vlaneseq
        %v514 = vshrl.u32 %v513, 7
        %v515 = vsub.s32 0, %v514
        %v516 = vrot.slane %v507, %v515
        %v522 = vunpack.c.l.b16 %v489
        %v523 = vunpack.c.l.b16 %v490
        %v524 = vunpack.c.l.b16 %v491
        %v525 = vunpack.c.l.b16 %v492
        %v526 = vpack.c.b16 %v523, %v522
        %v527 = vpack.c.b16 %v525, %v524
        %vm530 = vcmask 261120
        %v532 = vsel %vm530, %v511, 0
        %534 = vmatprep.subr.bf16.mxu0 0
        %535 = vmatpush1.bf16.msra.mxu0 %v526
        %536 = vmatprep.subr.bf16.mxu0 0
        %537 = vmatpush1.bf16.msra.mxu0 %v527
        %538 = vmatprep.subr.bf16.mxu0 0
        %539 = vmatpush1.bf16.msra.mxu0 0
        %540 = vmatprep.subr.bf16.mxu0 0
        %541 = vmatpush1.bf16.msra.mxu0 0
        %542 = vmatprep.subr.bf16.mxu0 0
        %543 = vmatpush1.bf16.msra.mxu0 0
        %544 = vmatprep.subr.bf16.mxu0 0
        %545 = vmatpush1.bf16.msra.mxu0 0
        %546 = vmatprep.subr.bf16.mxu0 0
        %547 = vmatpush1.bf16.msra.mxu0 0
        %548 = vmatprep.subr.bf16.mxu0 0
        %549 = vmatpush1.bf16.msra.mxu0 0
        %550 = vmatprep.subr.bf16.mxu0 0
        %551 = vmatpush1.bf16.msra.mxu0 0
        %552 = vmatprep.subr.bf16.mxu0 0
        %553 = vmatpush1.bf16.msra.mxu0 0
        %554 = vmatprep.subr.bf16.mxu0 0
        %555 = vmatpush1.bf16.msra.mxu0 0
        %556 = vmatprep.subr.bf16.mxu0 0
        %557 = vmatpush1.bf16.msra.mxu0 0
        %558 = vmatprep.subr.bf16.mxu0 0
        %559 = vmatpush1.bf16.msra.mxu0 0
        %560 = vmatprep.subr.bf16.mxu0 0
        %561 = vmatpush1.bf16.msra.mxu0 0
        %562 = vmatprep.subr.bf16.mxu0 0
        %563 = vmatpush1.bf16.msra.mxu0 0
        %564 = vmatprep.subr.bf16.mxu0 0
        %565 = vmatpush1.bf16.msra.mxu0 0
        %566 = vmatprep.mubr.bf16.mxu0 0
        %567 = vmatmul.mubr.bf16.gmra.mrb[0].mxu0 %v532
        %v568 = vpop.f32.mrb[0].mxu0
        %v569 = vadd.f32 %v516, %v568
        %v570 = vpop.f32.mrb[0].mxu0
        %v571 = vpop.f32.mrb[0].mxu0
        %v572 = vadd.f32 %v516, %v571
        %v573 = vpop.f32.mrb[0].mxu0
        %574 = vdwg.mxu0
        %v575 = vmax.f32 %v569, 0.0
        %v576 = vmax.f32 %v572, 0.0
        %v581 = vunpack.c.l.b16 %v493
        %v582 = vunpack.c.l.b16 %v494
        %v583 = vunpack.c.l.b16 %v495
        %v584 = vunpack.c.l.b16 %v496
        %v585 = vpack.c.b16 %v582, %v581
        %v586 = vpack.c.b16 %v584, %v583
        %589 = vmatprep.subr.bf16.mxu0 0
        %590 = vmatpush1.bf16.msra.mxu0 %v585
        %591 = vmatprep.subr.bf16.mxu0 0
        %592 = vmatpush1.bf16.msra.mxu0 %v586
        %593 = vmatprep.subr.bf16.mxu0 0
        %594 = vmatpush1.bf16.msra.mxu0 0
        %595 = vmatprep.subr.bf16.mxu0 0
        %596 = vmatpush1.bf16.msra.mxu0 0
        %597 = vmatprep.subr.bf16.mxu0 0
        %598 = vmatpush1.bf16.msra.mxu0 0
        %599 = vmatprep.subr.bf16.mxu0 0
        %600 = vmatpush1.bf16.msra.mxu0 0
        %601 = vmatprep.subr.bf16.mxu0 0
        %602 = vmatpush1.bf16.msra.mxu0 0
        %603 = vmatprep.subr.bf16.mxu0 0
        %604 = vmatpush1.bf16.msra.mxu0 0
        %605 = vmatprep.subr.bf16.mxu0 0
        %606 = vmatpush1.bf16.msra.mxu0 0
        %607 = vmatprep.subr.bf16.mxu0 0
        %608 = vmatpush1.bf16.msra.mxu0 0
        %609 = vmatprep.subr.bf16.mxu0 0
        %610 = vmatpush1.bf16.msra.mxu0 0
        %611 = vmatprep.subr.bf16.mxu0 0
        %612 = vmatpush1.bf16.msra.mxu0 0
        %613 = vmatprep.subr.bf16.mxu0 0
        %614 = vmatpush1.bf16.msra.mxu0 0
        %615 = vmatprep.subr.bf16.mxu0 0
        %616 = vmatpush1.bf16.msra.mxu0 0
        %617 = vmatprep.subr.bf16.mxu0 0
        %618 = vmatpush1.bf16.msra.mxu0 0
        %619 = vmatprep.subr.bf16.mxu0 0
        %620 = vmatpush1.bf16.msra.mxu0 0
        %621 = vmatprep.mubr.bf16.mxu0 0
        %622 = vmatmul.mubr.bf16.gmra.mrb[0].mxu0 %v532
        %v623 = vpop.f32.mrb[0].mxu0
        %v624 = vadd.f32 0.0, %v623
        %v625 = vpop.f32.mrb[0].mxu0
        %v626 = vpop.f32.mrb[0].mxu0
        %v627 = vadd.f32 0.0, %v626
        %v628 = vpop.f32.mrb[0].mxu0
        %629 = vdwg.mxu0
        %v634 = vunpack.c.l.b16 %v497
        %v635 = vunpack.c.l.b16 %v498
        %v636 = vunpack.c.l.b16 %v499
        %v637 = vunpack.c.l.b16 %v500
        %v638 = vpack.c.b16 %v635, %v634
        %v639 = vpack.c.b16 %v637, %v636
        %642 = vmatprep.subr.bf16.mxu0 0
        %643 = vmatpush1.bf16.msra.mxu0 %v638
        %644 = vmatprep.subr.bf16.mxu0 0
        %645 = vmatpush1.bf16.msra.mxu0 %v639
        %646 = vmatprep.subr.bf16.mxu0 0
        %647 = vmatpush1.bf16.msra.mxu0 0
        %648 = vmatprep.subr.bf16.mxu0 0
        %649 = vmatpush1.bf16.msra.mxu0 0
        %650 = vmatprep.subr.bf16.mxu0 0
        %651 = vmatpush1.bf16.msra.mxu0 0
        %652 = vmatprep.subr.bf16.mxu0 0
        %653 = vmatpush1.bf16.msra.mxu0 0
        %654 = vmatprep.subr.bf16.mxu0 0
        %655 = vmatpush1.bf16.msra.mxu0 0
        %656 = vmatprep.subr.bf16.mxu0 0
        %657 = vmatpush1.bf16.msra.mxu0 0
        %658 = vmatprep.subr.bf16.mxu0 0
        %659 = vmatpush1.bf16.msra.mxu0 0
        %660 = vmatprep.subr.bf16.mxu0 0
        %661 = vmatpush1.bf16.msra.mxu0 0
        %662 = vmatprep.subr.bf16.mxu0 0
        %663 = vmatpush1.bf16.msra.mxu0 0
        %664 = vmatprep.subr.bf16.mxu0 0
        %665 = vmatpush1.bf16.msra.mxu0 0
        %666 = vmatprep.subr.bf16.mxu0 0
        %667 = vmatpush1.bf16.msra.mxu0 0
        %668 = vmatprep.subr.bf16.mxu0 0
        %669 = vmatpush1.bf16.msra.mxu0 0
        %670 = vmatprep.subr.bf16.mxu0 0
        %671 = vmatpush1.bf16.msra.mxu0 0
        %672 = vmatprep.subr.bf16.mxu0 0
        %673 = vmatpush1.bf16.msra.mxu0 0
        %674 = vmatprep.mubr.bf16.mxu0 0
        %675 = vmatmul.mubr.bf16.gmra.mrb[0].mxu0 %v532
        %v676 = vpop.f32.mrb[0].mxu0
        %v677 = vadd.f32 0.0, %v676
        %v678 = vpop.f32.mrb[0].mxu0
        %v679 = vpop.f32.mrb[0].mxu0
        %v680 = vadd.f32 0.0, %v679
        %v681 = vpop.f32.mrb[0].mxu0
        %682 = vdwg.mxu0
        %v683 = vpack.c.bf16 %v627, %v624
        %v685 = vlaneseq
        %v686 = vshrl.u32 %v685, 7
        %v687 = vsub.s32 0, %v686
        %v688 = vrot.slane %v508, %v687
        %v692 = vunpack.c.l.b16 %v485
        %v693 = vunpack.c.l.b16 %v486
        %v694 = vpack.c.b16 %v693, %v692
        %vm695 = vcmask 130048
        %v697 = vsel %vm695, %v694, 0
        %699 = vmatprep.subr.bf16.mxu0 0
        %700 = vmatpush1.bf16.msra.mxu0 %v683
        %701 = vmatprep.subr.bf16.mxu0 0
        %702 = vmatpush1.bf16.msra.mxu0 0
        %703 = vmatprep.subr.bf16.mxu0 0
        %704 = vmatpush1.bf16.msra.mxu0 0
        %705 = vmatprep.subr.bf16.mxu0 0
        %706 = vmatpush1.bf16.msra.mxu0 0
        %707 = vmatprep.subr.bf16.mxu0 0
        %708 = vmatpush1.bf16.msra.mxu0 0
        %709 = vmatprep.subr.bf16.mxu0 0
        %710 = vmatpush1.bf16.msra.mxu0 0
        %711 = vmatprep.subr.bf16.mxu0 0
        %712 = vmatpush1.bf16.msra.mxu0 0
        %713 = vmatprep.subr.bf16.mxu0 0
        %714 = vmatpush1.bf16.msra.mxu0 0
        %715 = vmatprep.subr.bf16.mxu0 0
        %716 = vmatpush1.bf16.msra.mxu0 0
        %717 = vmatprep.subr.bf16.mxu0 0
        %718 = vmatpush1.bf16.msra.mxu0 0
        %719 = vmatprep.subr.bf16.mxu0 0
        %720 = vmatpush1.bf16.msra.mxu0 0
        %721 = vmatprep.subr.bf16.mxu0 0
        %722 = vmatpush1.bf16.msra.mxu0 0
        %723 = vmatprep.subr.bf16.mxu0 0
        %724 = vmatpush1.bf16.msra.mxu0 0
        %725 = vmatprep.subr.bf16.mxu0 0
        %726 = vmatpush1.bf16.msra.mxu0 0
        %727 = vmatprep.subr.bf16.mxu0 0
        %728 = vmatpush1.bf16.msra.mxu0 0
        %729 = vmatprep.subr.bf16.mxu0 0
        %730 = vmatpush1.bf16.msra.mxu0 0
        %731 = vmatprep.mubr.bf16.mxu0 0
        %732 = vmatmul.mubr.bf16.gmra.mrb[0].mxu0 %v697
        %v733 = vpop.f32.mrb[0].mxu0
        %v734 = vadd.f32 %v688, %v733
        %v735 = vpop.f32.mrb[0].mxu0
        %v736 = vpop.f32.mrb[0].mxu0
        %v737 = vadd.f32 %v688, %v736
        %v738 = vpop.f32.mrb[0].mxu0
        %739 = vdwg.mxu0
        %v740 = vmax.f32 %v734, 0.0
        %v741 = vmax.f32 %v737, 0.0
        %v742 = vpack.c.bf16 %v680, %v677
        %v744 = vlaneseq
        %v745 = vshrl.u32 %v744, 7
        %v746 = vsub.s32 0, %v745
        %v747 = vrot.slane %v509, %v746
        %v751 = vunpack.c.l.b16 %v487
        %v752 = vunpack.c.l.b16 %v488
        %v753 = vpack.c.b16 %v752, %v751
        %v755 = vsel %vm695, %v753, 0
        %757 = vmatprep.subr.bf16.mxu0 0
        %758 = vmatpush1.bf16.msra.mxu0 %v742
        %759 = vmatprep.subr.bf16.mxu0 0
        %760 = vmatpush1.bf16.msra.mxu0 0
        %761 = vmatprep.subr.bf16.mxu0 0
        %762 = vmatpush1.bf16.msra.mxu0 0
        %763 = vmatprep.subr.bf16.mxu0 0
        %764 = vmatpush1.bf16.msra.mxu0 0
        %765 = vmatprep.subr.bf16.mxu0 0
        %766 = vmatpush1.bf16.msra.mxu0 0
        %767 = vmatprep.subr.bf16.mxu0 0
        %768 = vmatpush1.bf16.msra.mxu0 0
        %769 = vmatprep.subr.bf16.mxu0 0
        %770 = vmatpush1.bf16.msra.mxu0 0
        %771 = vmatprep.subr.bf16.mxu0 0
        %772 = vmatpush1.bf16.msra.mxu0 0
        %773 = vmatprep.subr.bf16.mxu0 0
        %774 = vmatpush1.bf16.msra.mxu0 0
        %775 = vmatprep.subr.bf16.mxu0 0
        %776 = vmatpush1.bf16.msra.mxu0 0
        %777 = vmatprep.subr.bf16.mxu0 0
        %778 = vmatpush1.bf16.msra.mxu0 0
        %779 = vmatprep.subr.bf16.mxu0 0
        %780 = vmatpush1.bf16.msra.mxu0 0
        %781 = vmatprep.subr.bf16.mxu0 0
        %782 = vmatpush1.bf16.msra.mxu0 0
        %783 = vmatprep.subr.bf16.mxu0 0
        %784 = vmatpush1.bf16.msra.mxu0 0
        %785 = vmatprep.subr.bf16.mxu0 0
        %786 = vmatpush1.bf16.msra.mxu0 0
        %787 = vmatprep.subr.bf16.mxu0 0
        %788 = vmatpush1.bf16.msra.mxu0 0
        %789 = vmatprep.mubr.bf16.mxu0 0
        %790 = vmatmul.mubr.bf16.gmra.mrb[0].mxu0 %v755
        %v791 = vpop.f32.mrb[0].mxu0
        %v792 = vadd.f32 %v747, %v791
        %v793 = vpop.f32.mrb[0].mxu0
        %v794 = vpop.f32.mrb[0].mxu0
        %v795 = vadd.f32 %v747, %v794
        %v796 = vpop.f32.mrb[0].mxu0
        %797 = vdwg.mxu0
        %v798 = vmax.f32 %v792, 0.0
        %v799 = vmax.f32 %v795, 0.0
        %v800 = vpack.c.bf16 %v576, %v575
        %v801 = vpack.c.bf16 %v741, %v740
        %v804 = vunpack.c.l.b16 %v503
        %v805 = vunpack.c.l.b16 %v504
        %v806 = vpack.c.b16 %v805, %v804
        %v809 = vsel %vm695, %v801, 0
        %811 = vmatprep.subr.bf16.mxu0 0
        %812 = vmatpush1.bf16.msra.mxu0 %v806
        %813 = vmatprep.subr.bf16.mxu0 0
        %814 = vmatpush1.bf16.msra.mxu0 0
        %815 = vmatprep.subr.bf16.mxu0 0
        %816 = vmatpush1.bf16.msra.mxu0 0
        %817 = vmatprep.subr.bf16.mxu0 0
        %818 = vmatpush1.bf16.msra.mxu0 0
        %819 = vmatprep.subr.bf16.mxu0 0
        %820 = vmatpush1.bf16.msra.mxu0 0
        %821 = vmatprep.subr.bf16.mxu0 0
        %822 = vmatpush1.bf16.msra.mxu0 0
        %823 = vmatprep.subr.bf16.mxu0 0
        %824 = vmatpush1.bf16.msra.mxu0 0
        %825 = vmatprep.subr.bf16.mxu0 0
        %826 = vmatpush1.bf16.msra.mxu0 0
        %827 = vmatprep.subr.bf16.mxu0 0
        %828 = vmatpush1.bf16.msra.mxu0 0
        %829 = vmatprep.subr.bf16.mxu0 0
        %830 = vmatpush1.bf16.msra.mxu0 0
        %831 = vmatprep.subr.bf16.mxu0 0
        %832 = vmatpush1.bf16.msra.mxu0 0
        %833 = vmatprep.subr.bf16.mxu0 0
        %834 = vmatpush1.bf16.msra.mxu0 0
        %835 = vmatprep.subr.bf16.mxu0 0
        %836 = vmatpush1.bf16.msra.mxu0 0
        %837 = vmatprep.subr.bf16.mxu0 0
        %838 = vmatpush1.bf16.msra.mxu0 0
        %839 = vmatprep.subr.bf16.mxu0 0
        %840 = vmatpush1.bf16.msra.mxu0 0
        %841 = vmatprep.subr.bf16.mxu0 0
        %842 = vmatpush1.bf16.msra.mxu0 0
        %843 = vmatprep.mubr.bf16.mxu0 0
        %844 = vmatmul.mubr.bf16.gmra.mrb[0].mxu0 %v809
        %v845 = vpop.f32.mrb[0].mxu0
        %v846 = vadd.f32 0.0, %v845
        %v847 = vpop.f32.mrb[0].mxu0
        %v848 = vpop.f32.mrb[0].mxu0
        %v849 = vadd.f32 0.0, %v848
        %v850 = vpop.f32.mrb[0].mxu0
        %851 = vdwg.mxu0
        %v854 = vunpack.c.l.b16 %v501
        %v855 = vunpack.c.l.b16 %v502
        %v856 = vpack.c.b16 %v855, %v854
        %v859 = vsel %vm695, %v800, 0
        %861 = vmatprep.subr.bf16.mxu0 0
        %862 = vmatpush1.bf16.msra.mxu0 %v856
        %863 = vmatprep.subr.bf16.mxu0 0
        %864 = vmatpush1.bf16.msra.mxu0 0
        %865 = vmatprep.subr.bf16.mxu0 0
        %866 = vmatpush1.bf16.msra.mxu0 0
        %867 = vmatprep.subr.bf16.mxu0 0
        %868 = vmatpush1.bf16.msra.mxu0 0
        %869 = vmatprep.subr.bf16.mxu0 0
        %870 = vmatpush1.bf16.msra.mxu0 0
        %871 = vmatprep.subr.bf16.mxu0 0
        %872 = vmatpush1.bf16.msra.mxu0 0
        %873 = vmatprep.subr.bf16.mxu0 0
        %874 = vmatpush1.bf16.msra.mxu0 0
        %875 = vmatprep.subr.bf16.mxu0 0
        %876 = vmatpush1.bf16.msra.mxu0 0
        %877 = vmatprep.subr.bf16.mxu0 0
        %878 = vmatpush1.bf16.msra.mxu0 0
        %879 = vmatprep.subr.bf16.mxu0 0
        %880 = vmatpush1.bf16.msra.mxu0 0
        %881 = vmatprep.subr.bf16.mxu0 0
        %882 = vmatpush1.bf16.msra.mxu0 0
        %883 = vmatprep.subr.bf16.mxu0 0
        %884 = vmatpush1.bf16.msra.mxu0 0
        %885 = vmatprep.subr.bf16.mxu0 0
        %886 = vmatpush1.bf16.msra.mxu0 0
        %887 = vmatprep.subr.bf16.mxu0 0
        %888 = vmatpush1.bf16.msra.mxu0 0
        %889 = vmatprep.subr.bf16.mxu0 0
        %890 = vmatpush1.bf16.msra.mxu0 0
        %891 = vmatprep.subr.bf16.mxu0 0
        %892 = vmatpush1.bf16.msra.mxu0 0
        %893 = vmatprep.mubr.bf16.mxu0 0
        %894 = vmatmul.mubr.bf16.gmra.mrb[0].mxu0 %v859
        %v895 = vpop.f32.mrb[0].mxu0
        %v896 = vadd.f32 %v846, %v895
        %v897 = vpop.f32.mrb[0].mxu0
        %v898 = vpop.f32.mrb[0].mxu0
        %v899 = vadd.f32 %v849, %v898
        %v900 = vpop.f32.mrb[0].mxu0
        %901 = vdwg.mxu0
        %v902 = vpack.c.bf16 %v799, %v798
        %v905 = vunpack.c.l.b16 %v505
        %v906 = vunpack.c.l.b16 %v506
        %v907 = vpack.c.b16 %v906, %v905
        %v910 = vsel %vm695, %v902, 0
        %912 = vmatprep.subr.bf16.mxu0 0
        %913 = vmatpush1.bf16.msra.mxu0 %v907
        %914 = vmatprep.subr.bf16.mxu0 0
        %915 = vmatpush1.bf16.msra.mxu0 0
        %916 = vmatprep.subr.bf16.mxu0 0
        %917 = vmatpush1.bf16.msra.mxu0 0
        %918 = vmatprep.subr.bf16.mxu0 0
        %919 = vmatpush1.bf16.msra.mxu0 0
        %920 = vmatprep.subr.bf16.mxu0 0
        %921 = vmatpush1.bf16.msra.mxu0 0
        %922 = vmatprep.subr.bf16.mxu0 0
        %923 = vmatpush1.bf16.msra.mxu0 0
        %924 = vmatprep.subr.bf16.mxu0 0
        %925 = vmatpush1.bf16.msra.mxu0 0
        %926 = vmatprep.subr.bf16.mxu0 0
        %927 = vmatpush1.bf16.msra.mxu0 0
        %928 = vmatprep.subr.bf16.mxu0 0
        %929 = vmatpush1.bf16.msra.mxu0 0
        %930 = vmatprep.subr.bf16.mxu0 0
        %931 = vmatpush1.bf16.msra.mxu0 0
        %932 = vmatprep.subr.bf16.mxu0 0
        %933 = vmatpush1.bf16.msra.mxu0 0
        %934 = vmatprep.subr.bf16.mxu0 0
        %935 = vmatpush1.bf16.msra.mxu0 0
        %936 = vmatprep.subr.bf16.mxu0 0
        %937 = vmatpush1.bf16.msra.mxu0 0
        %938 = vmatprep.subr.bf16.mxu0 0
        %939 = vmatpush1.bf16.msra.mxu0 0
        %940 = vmatprep.subr.bf16.mxu0 0
        %941 = vmatpush1.bf16.msra.mxu0 0
        %942 = vmatprep.subr.bf16.mxu0 0
        %943 = vmatpush1.bf16.msra.mxu0 0
        %944 = vmatprep.mubr.bf16.mxu0 0
        %945 = vmatmul.mubr.bf16.gmra.mrb[0].mxu0 %v910
        %v946 = vpop.f32.mrb[0].mxu0
        %v947 = vadd.f32 0.0, %v946
        %v948 = vpop.f32.mrb[0].mxu0
        %v949 = vpop.f32.mrb[0].mxu0
        %v950 = vadd.f32 0.0, %v949
        %v951 = vpop.f32.mrb[0].mxu0
        %952 = vdwg.mxu0
        %v953 = vadd.f32 %v896, %v947
        %v954 = vadd.f32 %v899, %v950
        %v956 = vlaneseq
        %v957 = vshrl.u32 %v956, 7
        %v958 = vsub.s32 0, %v957
        %v959 = vrot.slane %v510, %v958
        %v961 = vadd.f32 %v953, %v959
        %v962 = vadd.f32 %v954, %v959
        %v963 = vadd.f32 %v961, %v483
        %v964 = vadd.f32 %v962, %v484
        %v965 = vmax.f32 %v963, 0.0
        %v966 = vmax.f32 %v964, 0.0
        %s967 = scalar_lea.vmem %s3, 16
        %v968 = vld [vmem:[%s967] sm:$0xf]
        %v969 = vld [vmem:[%s967 + $0x4] sm:$0xf]
        %v970 = vld [vmem:[%s967 + $0x8] sm:$0xf]
        %v971 = vld [vmem:[%s967 + $0xc] sm:$0xf]
        %s972 = scalar_lea.vmem %s4, 16
        %v973 = vld [vmem:[%s972] sm:$0xf]
        %v974 = vld [vmem:[%s972 + $0x4] sm:$0xf]
        %v975 = vld [vmem:[%s972 + $0x8] sm:$0xf]
        %v976 = vld [vmem:[%s972 + $0xc] sm:$0xf]
        %s977 = scalar_lea.vmem %s5, 16
        %v978 = vld [vmem:[%s977] sm:$0xf]
        %v979 = vld [vmem:[%s977 + $0x4] sm:$0xf]
        %v980 = vld [vmem:[%s977 + $0x8] sm:$0xf]
        %v981 = vld [vmem:[%s977 + $0xc] sm:$0xf]
        %s982 = scalar_lea.vmem %s6, 8
        %v983 = vld [vmem:[%s982] sm:$0xf]
        %v984 = vld [vmem:[%s982 + $0x4] sm:$0xf]
        %s985 = scalar_lea.vmem %s7, 8
        %v986 = vld [vmem:[%s985] sm:$0xf]
        %v987 = vld [vmem:[%s985 + $0x4] sm:$0xf]
        %s988 = scalar_lea.vmem %s8, 8
        %v989 = vld [vmem:[%s988] sm:$0xf]
        %v990 = vld [vmem:[%s988 + $0x4] sm:$0xf]
        %s991 = scalar_lea.vmem %s9, 1
        %v992 = vld [vmem:[%s991] sm:$0x1]
        %s993 = scalar_lea.vmem %s10, 1
        %v994 = vld [vmem:[%s993] sm:$0x1]
        %s995 = scalar_lea.vmem %s11, 1
        %v996 = vld [vmem:[%s995] sm:$0x1]
        %s997 = scalar_lea.vmem %s12, 1
        %v998 = vld [vmem:[%s997] sm:$0x1]
        %v999 = vpack.c.bf16 %v966, %v965
        %v1001 = vlaneseq
        %v1002 = vshrl.u32 %v1001, 7
        %v1003 = vsub.s32 0, %v1002
        %v1004 = vrot.slane %v992, %v1003
        %v1010 = vunpack.c.l.b16 %v968
        %v1011 = vunpack.c.l.b16 %v969
        %v1012 = vunpack.c.l.b16 %v970
        %v1013 = vunpack.c.l.b16 %v971
        %v1014 = vpack.c.b16 %v1011, %v1010
        %v1015 = vpack.c.b16 %v1013, %v1012
        %v1019 = vsel %vm530, %v999, 0
        %1021 = vmatprep.subr.bf16.mxu0 0
        %1022 = vmatpush1.bf16.msra.mxu0 %v1014
        %1023 = vmatprep.subr.bf16.mxu0 0
        %1024 = vmatpush1.bf16.msra.mxu0 %v1015
        %1025 = vmatprep.subr.bf16.mxu0 0
        %1026 = vmatpush1.bf16.msra.mxu0 0
        %1027 = vmatprep.subr.bf16.mxu0 0
        %1028 = vmatpush1.bf16.msra.mxu0 0
        %1029 = vmatprep.subr.bf16.mxu0 0
        %1030 = vmatpush1.bf16.msra.mxu0 0
        %1031 = vmatprep.subr.bf16.mxu0 0
        %1032 = vmatpush1.bf16.msra.mxu0 0
        %1033 = vmatprep.subr.bf16.mxu0 0
        %1034 = vmatpush1.bf16.msra.mxu0 0
        %1035 = vmatprep.subr.bf16.mxu0 0
        %1036 = vmatpush1.bf16.msra.mxu0 0
        %1037 = vmatprep.subr.bf16.mxu0 0
        %1038 = vmatpush1.bf16.msra.mxu0 0
        %1039 = vmatprep.subr.bf16.mxu0 0
        %1040 = vmatpush1.bf16.msra.mxu0 0
        %1041 = vmatprep.subr.bf16.mxu0 0
        %1042 = vmatpush1.bf16.msra.mxu0 0
        %1043 = vmatprep.subr.bf16.mxu0 0
        %1044 = vmatpush1.bf16.msra.mxu0 0
        %1045 = vmatprep.subr.bf16.mxu0 0
        %1046 = vmatpush1.bf16.msra.mxu0 0
        %1047 = vmatprep.subr.bf16.mxu0 0
        %1048 = vmatpush1.bf16.msra.mxu0 0
        %1049 = vmatprep.subr.bf16.mxu0 0
        %1050 = vmatpush1.bf16.msra.mxu0 0
        %1051 = vmatprep.subr.bf16.mxu0 0
        %1052 = vmatpush1.bf16.msra.mxu0 0
        %1053 = vmatprep.mubr.bf16.mxu0 0
        %1054 = vmatmul.mubr.bf16.gmra.mrb[0].mxu0 %v1019
        %v1055 = vpop.f32.mrb[0].mxu0
        %v1056 = vadd.f32 %v1004, %v1055
        %v1057 = vpop.f32.mrb[0].mxu0
        %v1058 = vpop.f32.mrb[0].mxu0
        %v1059 = vadd.f32 %v1004, %v1058
        %v1060 = vpop.f32.mrb[0].mxu0
        %1061 = vdwg.mxu0
        %v1062 = vmax.f32 %v1056, 0.0
        %v1063 = vmax.f32 %v1059, 0.0
        %v1068 = vunpack.c.l.b16 %v973
        %v1069 = vunpack.c.l.b16 %v974
        %v1070 = vunpack.c.l.b16 %v975
        %v1071 = vunpack.c.l.b16 %v976
        %v1072 = vpack.c.b16 %v1069, %v1068
        %v1073 = vpack.c.b16 %v1071, %v1070
        %1076 = vmatprep.subr.bf16.mxu0 0
        %1077 = vmatpush1.bf16.msra.mxu0 %v1072
        %1078 = vmatprep.subr.bf16.mxu0 0
        %1079 = vmatpush1.bf16.msra.mxu0 %v1073
        %1080 = vmatprep.subr.bf16.mxu0 0
        %1081 = vmatpush1.bf16.msra.mxu0 0
        %1082 = vmatprep.subr.bf16.mxu0 0
        %1083 = vmatpush1.bf16.msra.mxu0 0
        %1084 = vmatprep.subr.bf16.mxu0 0
        %1085 = vmatpush1.bf16.msra.mxu0 0
        %1086 = vmatprep.subr.bf16.mxu0 0
        %1087 = vmatpush1.bf16.msra.mxu0 0
        %1088 = vmatprep.subr.bf16.mxu0 0
        %1089 = vmatpush1.bf16.msra.mxu0 0
        %1090 = vmatprep.subr.bf16.mxu0 0
        %1091 = vmatpush1.bf16.msra.mxu0 0
        %1092 = vmatprep.subr.bf16.mxu0 0
        %1093 = vmatpush1.bf16.msra.mxu0 0
        %1094 = vmatprep.subr.bf16.mxu0 0
        %1095 = vmatpush1.bf16.msra.mxu0 0
        %1096 = vmatprep.subr.bf16.mxu0 0
        %1097 = vmatpush1.bf16.msra.mxu0 0
        %1098 = vmatprep.subr.bf16.mxu0 0
        %1099 = vmatpush1.bf16.msra.mxu0 0
        %1100 = vmatprep.subr.bf16.mxu0 0
        %1101 = vmatpush1.bf16.msra.mxu0 0
        %1102 = vmatprep.subr.bf16.mxu0 0
        %1103 = vmatpush1.bf16.msra.mxu0 0
        %1104 = vmatprep.subr.bf16.mxu0 0
        %1105 = vmatpush1.bf16.msra.mxu0 0
        %1106 = vmatprep.subr.bf16.mxu0 0
        %1107 = vmatpush1.bf16.msra.mxu0 0
        %1108 = vmatprep.mubr.bf16.mxu0 0
        %1109 = vmatmul.mubr.bf16.gmra.mrb[0].mxu0 %v1019
        %v1110 = vpop.f32.mrb[0].mxu0
        %v1111 = vadd.f32 0.0, %v1110
        %v1112 = vpop.f32.mrb[0].mxu0
        %v1113 = vpop.f32.mrb[0].mxu0
        %v1114 = vadd.f32 0.0, %v1113
        %v1115 = vpop.f32.mrb[0].mxu0
        %1116 = vdwg.mxu0
        %v1121 = vunpack.c.l.b16 %v978
        %v1122 = vunpack.c.l.b16 %v979
        %v1123 = vunpack.c.l.b16 %v980
        %v1124 = vunpack.c.l.b16 %v981
        %v1125 = vpack.c.b16 %v1122, %v1121
        %v1126 = vpack.c.b16 %v1124, %v1123
        %1129 = vmatprep.subr.bf16.mxu0 0
        %1130 = vmatpush1.bf16.msra.mxu0 %v1125
        %1131 = vmatprep.subr.bf16.mxu0 0
        %1132 = vmatpush1.bf16.msra.mxu0 %v1126
        %1133 = vmatprep.subr.bf16.mxu0 0
        %1134 = vmatpush1.bf16.msra.mxu0 0
        %1135 = vmatprep.subr.bf16.mxu0 0
        %1136 = vmatpush1.bf16.msra.mxu0 0
        %1137 = vmatprep.subr.bf16.mxu0 0
        %1138 = vmatpush1.bf16.msra.mxu0 0
        %1139 = vmatprep.subr.bf16.mxu0 0
        %1140 = vmatpush1.bf16.msra.mxu0 0
        %1141 = vmatprep.subr.bf16.mxu0 0
        %1142 = vmatpush1.bf16.msra.mxu0 0
        %1143 = vmatprep.subr.bf16.mxu0 0
        %1144 = vmatpush1.bf16.msra.mxu0 0
        %1145 = vmatprep.subr.bf16.mxu0 0
        %1146 = vmatpush1.bf16.msra.mxu0 0
        %1147 = vmatprep.subr.bf16.mxu0 0
        %1148 = vmatpush1.bf16.msra.mxu0 0
        %1149 = vmatprep.subr.bf16.mxu0 0
        %1150 = vmatpush1.bf16.msra.mxu0 0
        %1151 = vmatprep.subr.bf16.mxu0 0
        %1152 = vmatpush1.bf16.msra.mxu0 0
        %1153 = vmatprep.subr.bf16.mxu0 0
        %1154 = vmatpush1.bf16.msra.mxu0 0
        %1155 = vmatprep.subr.bf16.mxu0 0
        %1156 = vmatpush1.bf16.msra.mxu0 0
        %1157 = vmatprep.subr.bf16.mxu0 0
        %1158 = vmatpush1.bf16.msra.mxu0 0
        %1159 = vmatprep.subr.bf16.mxu0 0
        %1160 = vmatpush1.bf16.msra.mxu0 0
        %1161 = vmatprep.mubr.bf16.mxu0 0
        %1162 = vmatmul.mubr.bf16.gmra.mrb[0].mxu0 %v1019
        %v1163 = vpop.f32.mrb[0].mxu0
        %v1164 = vadd.f32 0.0, %v1163
        %v1165 = vpop.f32.mrb[0].mxu0
        %v1166 = vpop.f32.mrb[0].mxu0
        %v1167 = vadd.f32 0.0, %v1166
        %v1168 = vpop.f32.mrb[0].mxu0
        %1169 = vdwg.mxu0
        %v1170 = vpack.c.bf16 %v1114, %v1111
        %v1172 = vlaneseq
        %v1173 = vshrl.u32 %v1172, 7
        %v1174 = vsub.s32 0, %v1173
        %v1175 = vrot.slane %v994, %v1174
        %1177 = vmatprep.subr.bf16.mxu0 0
        %1178 = vmatpush1.bf16.msra.mxu0 %v1170
        %1179 = vmatprep.subr.bf16.mxu0 0
        %1180 = vmatpush1.bf16.msra.mxu0 0
        %1181 = vmatprep.subr.bf16.mxu0 0
        %1182 = vmatpush1.bf16.msra.mxu0 0
        %1183 = vmatprep.subr.bf16.mxu0 0
        %1184 = vmatpush1.bf16.msra.mxu0 0
        %1185 = vmatprep.subr.bf16.mxu0 0
        %1186 = vmatpush1.bf16.msra.mxu0 0
        %1187 = vmatprep.subr.bf16.mxu0 0
        %1188 = vmatpush1.bf16.msra.mxu0 0
        %1189 = vmatprep.subr.bf16.mxu0 0
        %1190 = vmatpush1.bf16.msra.mxu0 0
        %1191 = vmatprep.subr.bf16.mxu0 0
        %1192 = vmatpush1.bf16.msra.mxu0 0
        %1193 = vmatprep.subr.bf16.mxu0 0
        %1194 = vmatpush1.bf16.msra.mxu0 0
        %1195 = vmatprep.subr.bf16.mxu0 0
        %1196 = vmatpush1.bf16.msra.mxu0 0
        %1197 = vmatprep.subr.bf16.mxu0 0
        %1198 = vmatpush1.bf16.msra.mxu0 0
        %1199 = vmatprep.subr.bf16.mxu0 0
        %1200 = vmatpush1.bf16.msra.mxu0 0
        %1201 = vmatprep.subr.bf16.mxu0 0
        %1202 = vmatpush1.bf16.msra.mxu0 0
        %1203 = vmatprep.subr.bf16.mxu0 0
        %1204 = vmatpush1.bf16.msra.mxu0 0
        %1205 = vmatprep.subr.bf16.mxu0 0
        %1206 = vmatpush1.bf16.msra.mxu0 0
        %1207 = vmatprep.subr.bf16.mxu0 0
        %1208 = vmatpush1.bf16.msra.mxu0 0
        %1209 = vmatprep.mubr.bf16.mxu0 0
        %1210 = vmatmul.mubr.bf16.gmra.mrb[0].mxu0 %v697
        %v1211 = vpop.f32.mrb[0].mxu0
        %v1212 = vadd.f32 %v1175, %v1211
        %v1213 = vpop.f32.mrb[0].mxu0
        %v1214 = vpop.f32.mrb[0].mxu0
        %v1215 = vadd.f32 %v1175, %v1214
        %v1216 = vpop.f32.mrb[0].mxu0
        %1217 = vdwg.mxu0
        %v1218 = vmax.f32 %v1212, 0.0
        %v1219 = vmax.f32 %v1215, 0.0
        %v1220 = vpack.c.bf16 %v1167, %v1164
        %v1222 = vlaneseq
        %v1223 = vshrl.u32 %v1222, 7
        %v1224 = vsub.s32 0, %v1223
        %v1225 = vrot.slane %v996, %v1224
        %1227 = vmatprep.subr.bf16.mxu0 0
        %1228 = vmatpush1.bf16.msra.mxu0 %v1220
        %1229 = vmatprep.subr.bf16.mxu0 0
        %1230 = vmatpush1.bf16.msra.mxu0 0
        %1231 = vmatprep.subr.bf16.mxu0 0
        %1232 = vmatpush1.bf16.msra.mxu0 0
        %1233 = vmatprep.subr.bf16.mxu0 0
        %1234 = vmatpush1.bf16.msra.mxu0 0
        %1235 = vmatprep.subr.bf16.mxu0 0
        %1236 = vmatpush1.bf16.msra.mxu0 0
        %1237 = vmatprep.subr.bf16.mxu0 0
        %1238 = vmatpush1.bf16.msra.mxu0 0
        %1239 = vmatprep.subr.bf16.mxu0 0
        %1240 = vmatpush1.bf16.msra.mxu0 0
        %1241 = vmatprep.subr.bf16.mxu0 0
        %1242 = vmatpush1.bf16.msra.mxu0 0
        %1243 = vmatprep.subr.bf16.mxu0 0
        %1244 = vmatpush1.bf16.msra.mxu0 0
        %1245 = vmatprep.subr.bf16.mxu0 0
        %1246 = vmatpush1.bf16.msra.mxu0 0
        %1247 = vmatprep.subr.bf16.mxu0 0
        %1248 = vmatpush1.bf16.msra.mxu0 0
        %1249 = vmatprep.subr.bf16.mxu0 0
        %1250 = vmatpush1.bf16.msra.mxu0 0
        %1251 = vmatprep.subr.bf16.mxu0 0
        %1252 = vmatpush1.bf16.msra.mxu0 0
        %1253 = vmatprep.subr.bf16.mxu0 0
        %1254 = vmatpush1.bf16.msra.mxu0 0
        %1255 = vmatprep.subr.bf16.mxu0 0
        %1256 = vmatpush1.bf16.msra.mxu0 0
        %1257 = vmatprep.subr.bf16.mxu0 0
        %1258 = vmatpush1.bf16.msra.mxu0 0
        %1259 = vmatprep.mubr.bf16.mxu0 0
        %1260 = vmatmul.mubr.bf16.gmra.mrb[0].mxu0 %v755
        %v1261 = vpop.f32.mrb[0].mxu0
        %v1262 = vadd.f32 %v1225, %v1261
        %v1263 = vpop.f32.mrb[0].mxu0
        %v1264 = vpop.f32.mrb[0].mxu0
        %v1265 = vadd.f32 %v1225, %v1264
        %v1266 = vpop.f32.mrb[0].mxu0
        %1267 = vdwg.mxu0
        %v1268 = vmax.f32 %v1262, 0.0
        %v1269 = vmax.f32 %v1265, 0.0
        %v1270 = vpack.c.bf16 %v1063, %v1062
        %v1271 = vpack.c.bf16 %v1219, %v1218
        %v1274 = vunpack.c.l.b16 %v986
        %v1275 = vunpack.c.l.b16 %v987
        %v1276 = vpack.c.b16 %v1275, %v1274
        %v1279 = vsel %vm695, %v1271, 0
        %1281 = vmatprep.subr.bf16.mxu0 0
        %1282 = vmatpush1.bf16.msra.mxu0 %v1276
        %1283 = vmatprep.subr.bf16.mxu0 0
        %1284 = vmatpush1.bf16.msra.mxu0 0
        %1285 = vmatprep.subr.bf16.mxu0 0
        %1286 = vmatpush1.bf16.msra.mxu0 0
        %1287 = vmatprep.subr.bf16.mxu0 0
        %1288 = vmatpush1.bf16.msra.mxu0 0
        %1289 = vmatprep.subr.bf16.mxu0 0
        %1290 = vmatpush1.bf16.msra.mxu0 0
        %1291 = vmatprep.subr.bf16.mxu0 0
        %1292 = vmatpush1.bf16.msra.mxu0 0
        %1293 = vmatprep.subr.bf16.mxu0 0
        %1294 = vmatpush1.bf16.msra.mxu0 0
        %1295 = vmatprep.subr.bf16.mxu0 0
        %1296 = vmatpush1.bf16.msra.mxu0 0
        %1297 = vmatprep.subr.bf16.mxu0 0
        %1298 = vmatpush1.bf16.msra.mxu0 0
        %1299 = vmatprep.subr.bf16.mxu0 0
        %1300 = vmatpush1.bf16.msra.mxu0 0
        %1301 = vmatprep.subr.bf16.mxu0 0
        %1302 = vmatpush1.bf16.msra.mxu0 0
        %1303 = vmatprep.subr.bf16.mxu0 0
        %1304 = vmatpush1.bf16.msra.mxu0 0
        %1305 = vmatprep.subr.bf16.mxu0 0
        %1306 = vmatpush1.bf16.msra.mxu0 0
        %1307 = vmatprep.subr.bf16.mxu0 0
        %1308 = vmatpush1.bf16.msra.mxu0 0
        %1309 = vmatprep.subr.bf16.mxu0 0
        %1310 = vmatpush1.bf16.msra.mxu0 0
        %1311 = vmatprep.subr.bf16.mxu0 0
        %1312 = vmatpush1.bf16.msra.mxu0 0
        %1313 = vmatprep.mubr.bf16.mxu0 0
        %1314 = vmatmul.mubr.bf16.gmra.mrb[0].mxu0 %v1279
        %v1315 = vpop.f32.mrb[0].mxu0
        %v1316 = vadd.f32 0.0, %v1315
        %v1317 = vpop.f32.mrb[0].mxu0
        %v1318 = vpop.f32.mrb[0].mxu0
        %v1319 = vadd.f32 0.0, %v1318
        %v1320 = vpop.f32.mrb[0].mxu0
        %1321 = vdwg.mxu0
        %v1324 = vunpack.c.l.b16 %v983
        %v1325 = vunpack.c.l.b16 %v984
        %v1326 = vpack.c.b16 %v1325, %v1324
        %v1329 = vsel %vm695, %v1270, 0
        %1331 = vmatprep.subr.bf16.mxu0 0
        %1332 = vmatpush1.bf16.msra.mxu0 %v1326
        %1333 = vmatprep.subr.bf16.mxu0 0
        %1334 = vmatpush1.bf16.msra.mxu0 0
        %1335 = vmatprep.subr.bf16.mxu0 0
        %1336 = vmatpush1.bf16.msra.mxu0 0
        %1337 = vmatprep.subr.bf16.mxu0 0
        %1338 = vmatpush1.bf16.msra.mxu0 0
        %1339 = vmatprep.subr.bf16.mxu0 0
        %1340 = vmatpush1.bf16.msra.mxu0 0
        %1341 = vmatprep.subr.bf16.mxu0 0
        %1342 = vmatpush1.bf16.msra.mxu0 0
        %1343 = vmatprep.subr.bf16.mxu0 0
        %1344 = vmatpush1.bf16.msra.mxu0 0
        %1345 = vmatprep.subr.bf16.mxu0 0
        %1346 = vmatpush1.bf16.msra.mxu0 0
        %1347 = vmatprep.subr.bf16.mxu0 0
        %1348 = vmatpush1.bf16.msra.mxu0 0
        %1349 = vmatprep.subr.bf16.mxu0 0
        %1350 = vmatpush1.bf16.msra.mxu0 0
        %1351 = vmatprep.subr.bf16.mxu0 0
        %1352 = vmatpush1.bf16.msra.mxu0 0
        %1353 = vmatprep.subr.bf16.mxu0 0
        %1354 = vmatpush1.bf16.msra.mxu0 0
        %1355 = vmatprep.subr.bf16.mxu0 0
        %1356 = vmatpush1.bf16.msra.mxu0 0
        %1357 = vmatprep.subr.bf16.mxu0 0
        %1358 = vmatpush1.bf16.msra.mxu0 0
        %1359 = vmatprep.subr.bf16.mxu0 0
        %1360 = vmatpush1.bf16.msra.mxu0 0
        %1361 = vmatprep.subr.bf16.mxu0 0
        %1362 = vmatpush1.bf16.msra.mxu0 0
        %1363 = vmatprep.mubr.bf16.mxu0 0
        %1364 = vmatmul.mubr.bf16.gmra.mrb[0].mxu0 %v1329
        %v1365 = vpop.f32.mrb[0].mxu0
        %v1366 = vadd.f32 %v1316, %v1365
        %v1367 = vpop.f32.mrb[0].mxu0
        %v1368 = vpop.f32.mrb[0].mxu0
        %v1369 = vadd.f32 %v1319, %v1368
        %v1370 = vpop.f32.mrb[0].mxu0
        %1371 = vdwg.mxu0
        %v1372 = vpack.c.bf16 %v1269, %v1268
        %v1375 = vunpack.c.l.b16 %v989
        %v1376 = vunpack.c.l.b16 %v990
        %v1377 = vpack.c.b16 %v1376, %v1375
        %v1380 = vsel %vm695, %v1372, 0
        %1382 = vmatprep.subr.bf16.mxu0 0
        %1383 = vmatpush1.bf16.msra.mxu0 %v1377
        %1384 = vmatprep.subr.bf16.mxu0 0
        %1385 = vmatpush1.bf16.msra.mxu0 0
        %1386 = vmatprep.subr.bf16.mxu0 0
        %1387 = vmatpush1.bf16.msra.mxu0 0
        %1388 = vmatprep.subr.bf16.mxu0 0
        %1389 = vmatpush1.bf16.msra.mxu0 0
        %1390 = vmatprep.subr.bf16.mxu0 0
        %1391 = vmatpush1.bf16.msra.mxu0 0
        %1392 = vmatprep.subr.bf16.mxu0 0
        %1393 = vmatpush1.bf16.msra.mxu0 0
        %1394 = vmatprep.subr.bf16.mxu0 0
        %1395 = vmatpush1.bf16.msra.mxu0 0
        %1396 = vmatprep.subr.bf16.mxu0 0
        %1397 = vmatpush1.bf16.msra.mxu0 0
        %1398 = vmatprep.subr.bf16.mxu0 0
        %1399 = vmatpush1.bf16.msra.mxu0 0
        %1400 = vmatprep.subr.bf16.mxu0 0
        %1401 = vmatpush1.bf16.msra.mxu0 0
        %1402 = vmatprep.subr.bf16.mxu0 0
        %1403 = vmatpush1.bf16.msra.mxu0 0
        %1404 = vmatprep.subr.bf16.mxu0 0
        %1405 = vmatpush1.bf16.msra.mxu0 0
        %1406 = vmatprep.subr.bf16.mxu0 0
        %1407 = vmatpush1.bf16.msra.mxu0 0
        %1408 = vmatprep.subr.bf16.mxu0 0
        %1409 = vmatpush1.bf16.msra.mxu0 0
        %1410 = vmatprep.subr.bf16.mxu0 0
        %1411 = vmatpush1.bf16.msra.mxu0 0
        %1412 = vmatprep.subr.bf16.mxu0 0
        %1413 = vmatpush1.bf16.msra.mxu0 0
        %1414 = vmatprep.mubr.bf16.mxu0 0
        %1415 = vmatmul.mubr.bf16.gmra.mrb[0].mxu0 %v1380
        %v1416 = vpop.f32.mrb[0].mxu0
        %v1417 = vadd.f32 0.0, %v1416
        %v1418 = vpop.f32.mrb[0].mxu0
        %v1419 = vpop.f32.mrb[0].mxu0
        %v1420 = vadd.f32 0.0, %v1419
        %v1421 = vpop.f32.mrb[0].mxu0
        %1422 = vdwg.mxu0
        %v1423 = vadd.f32 %v1366, %v1417
        %v1424 = vadd.f32 %v1369, %v1420
        %v1426 = vlaneseq
        %v1427 = vshrl.u32 %v1426, 7
        %v1428 = vsub.s32 0, %v1427
        %v1429 = vrot.slane %v998, %v1428
        %v1431 = vadd.f32 %v1423, %v1429
        %v1432 = vadd.f32 %v1424, %v1429
        %v1433 = vadd.f32 %v1431, %v965
        %v1434 = vadd.f32 %v1432, %v966
        %v1435 = vmax.f32 %v1433, 0.0
        %v1436 = vmax.f32 %v1434, 0.0
        %s1437 = scalar_lea.vmem %s3, 32
        %v1438 = vld [vmem:[%s1437] sm:$0xf]
        %v1439 = vld [vmem:[%s1437 + $0x4] sm:$0xf]
        %v1440 = vld [vmem:[%s1437 + $0x8] sm:$0xf]
        %v1441 = vld [vmem:[%s1437 + $0xc] sm:$0xf]
        %s1442 = scalar_lea.vmem %s4, 32
        %v1443 = vld [vmem:[%s1442] sm:$0xf]
        %v1444 = vld [vmem:[%s1442 + $0x4] sm:$0xf]
        %v1445 = vld [vmem:[%s1442 + $0x8] sm:$0xf]
        %v1446 = vld [vmem:[%s1442 + $0xc] sm:$0xf]
        %s1447 = scalar_lea.vmem %s5, 32
        %v1448 = vld [vmem:[%s1447] sm:$0xf]
        %v1449 = vld [vmem:[%s1447 + $0x4] sm:$0xf]
        %v1450 = vld [vmem:[%s1447 + $0x8] sm:$0xf]
        %v1451 = vld [vmem:[%s1447 + $0xc] sm:$0xf]
        %s1452 = scalar_lea.vmem %s6, 16
        %v1453 = vld [vmem:[%s1452] sm:$0xf]
        %v1454 = vld [vmem:[%s1452 + $0x4] sm:$0xf]
        %s1455 = scalar_lea.vmem %s7, 16
        %v1456 = vld [vmem:[%s1455] sm:$0xf]
        %v1457 = vld [vmem:[%s1455 + $0x4] sm:$0xf]
        %s1458 = scalar_lea.vmem %s8, 16
        %v1459 = vld [vmem:[%s1458] sm:$0xf]
        %v1460 = vld [vmem:[%s1458 + $0x4] sm:$0xf]
        %s1461 = scalar_lea.vmem %s9, 2
        %v1462 = vld [vmem:[%s1461] sm:$0x1]
        %s1463 = scalar_lea.vmem %s10, 2
        %v1464 = vld [vmem:[%s1463] sm:$0x1]
        %s1465 = scalar_lea.vmem %s11, 2
        %v1466 = vld [vmem:[%s1465] sm:$0x1]
        %s1467 = scalar_lea.vmem %s12, 2
        %v1468 = vld [vmem:[%s1467] sm:$0x1]
        %v1469 = vpack.c.bf16 %v1436, %v1435
        %v1471 = vlaneseq
        %v1472 = vshrl.u32 %v1471, 7
        %v1473 = vsub.s32 0, %v1472
        %v1474 = vrot.slane %v1462, %v1473
        %v1480 = vunpack.c.l.b16 %v1438
        %v1481 = vunpack.c.l.b16 %v1439
        %v1482 = vunpack.c.l.b16 %v1440
        %v1483 = vunpack.c.l.b16 %v1441
        %v1484 = vpack.c.b16 %v1481, %v1480
        %v1485 = vpack.c.b16 %v1483, %v1482
        %v1489 = vsel %vm530, %v1469, 0
        %1491 = vmatprep.subr.bf16.mxu0 0
        %1492 = vmatpush1.bf16.msra.mxu0 %v1484
        %1493 = vmatprep.subr.bf16.mxu0 0
        %1494 = vmatpush1.bf16.msra.mxu0 %v1485
        %1495 = vmatprep.subr.bf16.mxu0 0
        %1496 = vmatpush1.bf16.msra.mxu0 0
        %1497 = vmatprep.subr.bf16.mxu0 0
        %1498 = vmatpush1.bf16.msra.mxu0 0
        %1499 = vmatprep.subr.bf16.mxu0 0
        %1500 = vmatpush1.bf16.msra.mxu0 0
        %1501 = vmatprep.subr.bf16.mxu0 0
        %1502 = vmatpush1.bf16.msra.mxu0 0
        %1503 = vmatprep.subr.bf16.mxu0 0
        %1504 = vmatpush1.bf16.msra.mxu0 0
        %1505 = vmatprep.subr.bf16.mxu0 0
        %1506 = vmatpush1.bf16.msra.mxu0 0
        %1507 = vmatprep.subr.bf16.mxu0 0
        %1508 = vmatpush1.bf16.msra.mxu0 0
        %1509 = vmatprep.subr.bf16.mxu0 0
        %1510 = vmatpush1.bf16.msra.mxu0 0
        %1511 = vmatprep.subr.bf16.mxu0 0
        %1512 = vmatpush1.bf16.msra.mxu0 0
        %1513 = vmatprep.subr.bf16.mxu0 0
        %1514 = vmatpush1.bf16.msra.mxu0 0
        %1515 = vmatprep.subr.bf16.mxu0 0
        %1516 = vmatpush1.bf16.msra.mxu0 0
        %1517 = vmatprep.subr.bf16.mxu0 0
        %1518 = vmatpush1.bf16.msra.mxu0 0
        %1519 = vmatprep.subr.bf16.mxu0 0
        %1520 = vmatpush1.bf16.msra.mxu0 0
        %1521 = vmatprep.subr.bf16.mxu0 0
        %1522 = vmatpush1.bf16.msra.mxu0 0
        %1523 = vmatprep.mubr.bf16.mxu0 0
        %1524 = vmatmul.mubr.bf16.gmra.mrb[0].mxu0 %v1489
        %v1525 = vpop.f32.mrb[0].mxu0
        %v1526 = vadd.f32 %v1474, %v1525
        %v1527 = vpop.f32.mrb[0].mxu0
        %v1528 = vpop.f32.mrb[0].mxu0
        %v1529 = vadd.f32 %v1474, %v1528
        %v1530 = vpop.f32.mrb[0].mxu0
        %1531 = vdwg.mxu0
        %v1532 = vmax.f32 %v1526, 0.0
        %v1533 = vmax.f32 %v1529, 0.0
        %v1538 = vunpack.c.l.b16 %v1443
        %v1539 = vunpack.c.l.b16 %v1444
        %v1540 = vunpack.c.l.b16 %v1445
        %v1541 = vunpack.c.l.b16 %v1446
        %v1542 = vpack.c.b16 %v1539, %v1538
        %v1543 = vpack.c.b16 %v1541, %v1540
        %1546 = vmatprep.subr.bf16.mxu0 0
        %1547 = vmatpush1.bf16.msra.mxu0 %v1542
        %1548 = vmatprep.subr.bf16.mxu0 0
        %1549 = vmatpush1.bf16.msra.mxu0 %v1543
        %1550 = vmatprep.subr.bf16.mxu0 0
        %1551 = vmatpush1.bf16.msra.mxu0 0
        %1552 = vmatprep.subr.bf16.mxu0 0
        %1553 = vmatpush1.bf16.msra.mxu0 0
        %1554 = vmatprep.subr.bf16.mxu0 0
        %1555 = vmatpush1.bf16.msra.mxu0 0
        %1556 = vmatprep.subr.bf16.mxu0 0
        %1557 = vmatpush1.bf16.msra.mxu0 0
        %1558 = vmatprep.subr.bf16.mxu0 0
        %1559 = vmatpush1.bf16.msra.mxu0 0
        %1560 = vmatprep.subr.bf16.mxu0 0
        %1561 = vmatpush1.bf16.msra.mxu0 0
        %1562 = vmatprep.subr.bf16.mxu0 0
        %1563 = vmatpush1.bf16.msra.mxu0 0
        %1564 = vmatprep.subr.bf16.mxu0 0
        %1565 = vmatpush1.bf16.msra.mxu0 0
        %1566 = vmatprep.subr.bf16.mxu0 0
        %1567 = vmatpush1.bf16.msra.mxu0 0
        %1568 = vmatprep.subr.bf16.mxu0 0
        %1569 = vmatpush1.bf16.msra.mxu0 0
        %1570 = vmatprep.subr.bf16.mxu0 0
        %1571 = vmatpush1.bf16.msra.mxu0 0
        %1572 = vmatprep.subr.bf16.mxu0 0
        %1573 = vmatpush1.bf16.msra.mxu0 0
        %1574 = vmatprep.subr.bf16.mxu0 0
        %1575 = vmatpush1.bf16.msra.mxu0 0
        %1576 = vmatprep.subr.bf16.mxu0 0
        %1577 = vmatpush1.bf16.msra.mxu0 0
        %1578 = vmatprep.mubr.bf16.mxu0 0
        %1579 = vmatmul.mubr.bf16.gmra.mrb[0].mxu0 %v1489
        %v1580 = vpop.f32.mrb[0].mxu0
        %v1581 = vadd.f32 0.0, %v1580
        %v1582 = vpop.f32.mrb[0].mxu0
        %v1583 = vpop.f32.mrb[0].mxu0
        %v1584 = vadd.f32 0.0, %v1583
        %v1585 = vpop.f32.mrb[0].mxu0
        %1586 = vdwg.mxu0
        %v1591 = vunpack.c.l.b16 %v1448
        %v1592 = vunpack.c.l.b16 %v1449
        %v1593 = vunpack.c.l.b16 %v1450
        %v1594 = vunpack.c.l.b16 %v1451
        %v1595 = vpack.c.b16 %v1592, %v1591
        %v1596 = vpack.c.b16 %v1594, %v1593
        %1599 = vmatprep.subr.bf16.mxu0 0
        %1600 = vmatpush1.bf16.msra.mxu0 %v1595
        %1601 = vmatprep.subr.bf16.mxu0 0
        %1602 = vmatpush1.bf16.msra.mxu0 %v1596
        %1603 = vmatprep.subr.bf16.mxu0 0
        %1604 = vmatpush1.bf16.msra.mxu0 0
        %1605 = vmatprep.subr.bf16.mxu0 0
        %1606 = vmatpush1.bf16.msra.mxu0 0
        %1607 = vmatprep.subr.bf16.mxu0 0
        %1608 = vmatpush1.bf16.msra.mxu0 0
        %1609 = vmatprep.subr.bf16.mxu0 0
        %1610 = vmatpush1.bf16.msra.mxu0 0
        %1611 = vmatprep.subr.bf16.mxu0 0
        %1612 = vmatpush1.bf16.msra.mxu0 0
        %1613 = vmatprep.subr.bf16.mxu0 0
        %1614 = vmatpush1.bf16.msra.mxu0 0
        %1615 = vmatprep.subr.bf16.mxu0 0
        %1616 = vmatpush1.bf16.msra.mxu0 0
        %1617 = vmatprep.subr.bf16.mxu0 0
        %1618 = vmatpush1.bf16.msra.mxu0 0
        %1619 = vmatprep.subr.bf16.mxu0 0
        %1620 = vmatpush1.bf16.msra.mxu0 0
        %1621 = vmatprep.subr.bf16.mxu0 0
        %1622 = vmatpush1.bf16.msra.mxu0 0
        %1623 = vmatprep.subr.bf16.mxu0 0
        %1624 = vmatpush1.bf16.msra.mxu0 0
        %1625 = vmatprep.subr.bf16.mxu0 0
        %1626 = vmatpush1.bf16.msra.mxu0 0
        %1627 = vmatprep.subr.bf16.mxu0 0
        %1628 = vmatpush1.bf16.msra.mxu0 0
        %1629 = vmatprep.subr.bf16.mxu0 0
        %1630 = vmatpush1.bf16.msra.mxu0 0
        %1631 = vmatprep.mubr.bf16.mxu0 0
        %1632 = vmatmul.mubr.bf16.gmra.mrb[0].mxu0 %v1489
        %v1633 = vpop.f32.mrb[0].mxu0
        %v1634 = vadd.f32 0.0, %v1633
        %v1635 = vpop.f32.mrb[0].mxu0
        %v1636 = vpop.f32.mrb[0].mxu0
        %v1637 = vadd.f32 0.0, %v1636
        %v1638 = vpop.f32.mrb[0].mxu0
        %1639 = vdwg.mxu0
        %v1640 = vpack.c.bf16 %v1584, %v1581
        %v1642 = vlaneseq
        %v1643 = vshrl.u32 %v1642, 7
        %v1644 = vsub.s32 0, %v1643
        %v1645 = vrot.slane %v1464, %v1644
        %1647 = vmatprep.subr.bf16.mxu0 0
        %1648 = vmatpush1.bf16.msra.mxu0 %v1640
        %1649 = vmatprep.subr.bf16.mxu0 0
        %1650 = vmatpush1.bf16.msra.mxu0 0
        %1651 = vmatprep.subr.bf16.mxu0 0
        %1652 = vmatpush1.bf16.msra.mxu0 0
        %1653 = vmatprep.subr.bf16.mxu0 0
        %1654 = vmatpush1.bf16.msra.mxu0 0
        %1655 = vmatprep.subr.bf16.mxu0 0
        %1656 = vmatpush1.bf16.msra.mxu0 0
        %1657 = vmatprep.subr.bf16.mxu0 0
        %1658 = vmatpush1.bf16.msra.mxu0 0
        %1659 = vmatprep.subr.bf16.mxu0 0
        %1660 = vmatpush1.bf16.msra.mxu0 0
        %1661 = vmatprep.subr.bf16.mxu0 0
        %1662 = vmatpush1.bf16.msra.mxu0 0
        %1663 = vmatprep.subr.bf16.mxu0 0
        %1664 = vmatpush1.bf16.msra.mxu0 0
        %1665 = vmatprep.subr.bf16.mxu0 0
        %1666 = vmatpush1.bf16.msra.mxu0 0
        %1667 = vmatprep.subr.bf16.mxu0 0
        %1668 = vmatpush1.bf16.msra.mxu0 0
        %1669 = vmatprep.subr.bf16.mxu0 0
        %1670 = vmatpush1.bf16.msra.mxu0 0
        %1671 = vmatprep.subr.bf16.mxu0 0
        %1672 = vmatpush1.bf16.msra.mxu0 0
        %1673 = vmatprep.subr.bf16.mxu0 0
        %1674 = vmatpush1.bf16.msra.mxu0 0
        %1675 = vmatprep.subr.bf16.mxu0 0
        %1676 = vmatpush1.bf16.msra.mxu0 0
        %1677 = vmatprep.subr.bf16.mxu0 0
        %1678 = vmatpush1.bf16.msra.mxu0 0
        %1679 = vmatprep.mubr.bf16.mxu0 0
        %1680 = vmatmul.mubr.bf16.gmra.mrb[0].mxu0 %v697
        %v1681 = vpop.f32.mrb[0].mxu0
        %v1682 = vadd.f32 %v1645, %v1681
        %v1683 = vpop.f32.mrb[0].mxu0
        %v1684 = vpop.f32.mrb[0].mxu0
        %v1685 = vadd.f32 %v1645, %v1684
        %v1686 = vpop.f32.mrb[0].mxu0
        %1687 = vdwg.mxu0
        %v1688 = vmax.f32 %v1682, 0.0
        %v1689 = vmax.f32 %v1685, 0.0
        %v1690 = vpack.c.bf16 %v1637, %v1634
        %v1692 = vlaneseq
        %v1693 = vshrl.u32 %v1692, 7
        %v1694 = vsub.s32 0, %v1693
        %v1695 = vrot.slane %v1466, %v1694
        %1697 = vmatprep.subr.bf16.mxu0 0
        %1698 = vmatpush1.bf16.msra.mxu0 %v1690
        %1699 = vmatprep.subr.bf16.mxu0 0
        %1700 = vmatpush1.bf16.msra.mxu0 0
        %1701 = vmatprep.subr.bf16.mxu0 0
        %1702 = vmatpush1.bf16.msra.mxu0 0
        %1703 = vmatprep.subr.bf16.mxu0 0
        %1704 = vmatpush1.bf16.msra.mxu0 0
        %1705 = vmatprep.subr.bf16.mxu0 0
        %1706 = vmatpush1.bf16.msra.mxu0 0
        %1707 = vmatprep.subr.bf16.mxu0 0
        %1708 = vmatpush1.bf16.msra.mxu0 0
        %1709 = vmatprep.subr.bf16.mxu0 0
        %1710 = vmatpush1.bf16.msra.mxu0 0
        %1711 = vmatprep.subr.bf16.mxu0 0
        %1712 = vmatpush1.bf16.msra.mxu0 0
        %1713 = vmatprep.subr.bf16.mxu0 0
        %1714 = vmatpush1.bf16.msra.mxu0 0
        %1715 = vmatprep.subr.bf16.mxu0 0
        %1716 = vmatpush1.bf16.msra.mxu0 0
        %1717 = vmatprep.subr.bf16.mxu0 0
        %1718 = vmatpush1.bf16.msra.mxu0 0
        %1719 = vmatprep.subr.bf16.mxu0 0
        %1720 = vmatpush1.bf16.msra.mxu0 0
        %1721 = vmatprep.subr.bf16.mxu0 0
        %1722 = vmatpush1.bf16.msra.mxu0 0
        %1723 = vmatprep.subr.bf16.mxu0 0
        %1724 = vmatpush1.bf16.msra.mxu0 0
        %1725 = vmatprep.subr.bf16.mxu0 0
        %1726 = vmatpush1.bf16.msra.mxu0 0
        %1727 = vmatprep.subr.bf16.mxu0 0
        %1728 = vmatpush1.bf16.msra.mxu0 0
        %1729 = vmatprep.mubr.bf16.mxu0 0
        %1730 = vmatmul.mubr.bf16.gmra.mrb[0].mxu0 %v755
        %v1731 = vpop.f32.mrb[0].mxu0
        %v1732 = vadd.f32 %v1695, %v1731
        %v1733 = vpop.f32.mrb[0].mxu0
        %v1734 = vpop.f32.mrb[0].mxu0
        %v1735 = vadd.f32 %v1695, %v1734
        %v1736 = vpop.f32.mrb[0].mxu0
        %1737 = vdwg.mxu0
        %v1738 = vmax.f32 %v1732, 0.0
        %v1739 = vmax.f32 %v1735, 0.0
        %v1740 = vpack.c.bf16 %v1533, %v1532
        %v1741 = vpack.c.bf16 %v1689, %v1688
        %v1744 = vunpack.c.l.b16 %v1456
        %v1745 = vunpack.c.l.b16 %v1457
        %v1746 = vpack.c.b16 %v1745, %v1744
        %v1749 = vsel %vm695, %v1741, 0
        %1751 = vmatprep.subr.bf16.mxu0 0
        %1752 = vmatpush1.bf16.msra.mxu0 %v1746
        %1753 = vmatprep.subr.bf16.mxu0 0
        %1754 = vmatpush1.bf16.msra.mxu0 0
        %1755 = vmatprep.subr.bf16.mxu0 0
        %1756 = vmatpush1.bf16.msra.mxu0 0
        %1757 = vmatprep.subr.bf16.mxu0 0
        %1758 = vmatpush1.bf16.msra.mxu0 0
        %1759 = vmatprep.subr.bf16.mxu0 0
        %1760 = vmatpush1.bf16.msra.mxu0 0
        %1761 = vmatprep.subr.bf16.mxu0 0
        %1762 = vmatpush1.bf16.msra.mxu0 0
        %1763 = vmatprep.subr.bf16.mxu0 0
        %1764 = vmatpush1.bf16.msra.mxu0 0
        %1765 = vmatprep.subr.bf16.mxu0 0
        %1766 = vmatpush1.bf16.msra.mxu0 0
        %1767 = vmatprep.subr.bf16.mxu0 0
        %1768 = vmatpush1.bf16.msra.mxu0 0
        %1769 = vmatprep.subr.bf16.mxu0 0
        %1770 = vmatpush1.bf16.msra.mxu0 0
        %1771 = vmatprep.subr.bf16.mxu0 0
        %1772 = vmatpush1.bf16.msra.mxu0 0
        %1773 = vmatprep.subr.bf16.mxu0 0
        %1774 = vmatpush1.bf16.msra.mxu0 0
        %1775 = vmatprep.subr.bf16.mxu0 0
        %1776 = vmatpush1.bf16.msra.mxu0 0
        %1777 = vmatprep.subr.bf16.mxu0 0
        %1778 = vmatpush1.bf16.msra.mxu0 0
        %1779 = vmatprep.subr.bf16.mxu0 0
        %1780 = vmatpush1.bf16.msra.mxu0 0
        %1781 = vmatprep.subr.bf16.mxu0 0
        %1782 = vmatpush1.bf16.msra.mxu0 0
        %1783 = vmatprep.mubr.bf16.mxu0 0
        %1784 = vmatmul.mubr.bf16.gmra.mrb[0].mxu0 %v1749
        %v1785 = vpop.f32.mrb[0].mxu0
        %v1786 = vadd.f32 0.0, %v1785
        %v1787 = vpop.f32.mrb[0].mxu0
        %v1788 = vpop.f32.mrb[0].mxu0
        %v1789 = vadd.f32 0.0, %v1788
        %v1790 = vpop.f32.mrb[0].mxu0
        %1791 = vdwg.mxu0
        %v1794 = vunpack.c.l.b16 %v1453
        %v1795 = vunpack.c.l.b16 %v1454
        %v1796 = vpack.c.b16 %v1795, %v1794
        %v1799 = vsel %vm695, %v1740, 0
        %1801 = vmatprep.subr.bf16.mxu0 0
        %1802 = vmatpush1.bf16.msra.mxu0 %v1796
        %1803 = vmatprep.subr.bf16.mxu0 0
        %1804 = vmatpush1.bf16.msra.mxu0 0
        %1805 = vmatprep.subr.bf16.mxu0 0
        %1806 = vmatpush1.bf16.msra.mxu0 0
        %1807 = vmatprep.subr.bf16.mxu0 0
        %1808 = vmatpush1.bf16.msra.mxu0 0
        %1809 = vmatprep.subr.bf16.mxu0 0
        %1810 = vmatpush1.bf16.msra.mxu0 0
        %1811 = vmatprep.subr.bf16.mxu0 0
        %1812 = vmatpush1.bf16.msra.mxu0 0
        %1813 = vmatprep.subr.bf16.mxu0 0
        %1814 = vmatpush1.bf16.msra.mxu0 0
        %1815 = vmatprep.subr.bf16.mxu0 0
        %1816 = vmatpush1.bf16.msra.mxu0 0
        %1817 = vmatprep.subr.bf16.mxu0 0
        %1818 = vmatpush1.bf16.msra.mxu0 0
        %1819 = vmatprep.subr.bf16.mxu0 0
        %1820 = vmatpush1.bf16.msra.mxu0 0
        %1821 = vmatprep.subr.bf16.mxu0 0
        %1822 = vmatpush1.bf16.msra.mxu0 0
        %1823 = vmatprep.subr.bf16.mxu0 0
        %1824 = vmatpush1.bf16.msra.mxu0 0
        %1825 = vmatprep.subr.bf16.mxu0 0
        %1826 = vmatpush1.bf16.msra.mxu0 0
        %1827 = vmatprep.subr.bf16.mxu0 0
        %1828 = vmatpush1.bf16.msra.mxu0 0
        %1829 = vmatprep.subr.bf16.mxu0 0
        %1830 = vmatpush1.bf16.msra.mxu0 0
        %1831 = vmatprep.subr.bf16.mxu0 0
        %1832 = vmatpush1.bf16.msra.mxu0 0
        %1833 = vmatprep.mubr.bf16.mxu0 0
        %1834 = vmatmul.mubr.bf16.gmra.mrb[0].mxu0 %v1799
        %v1835 = vpop.f32.mrb[0].mxu0
        %v1836 = vadd.f32 %v1786, %v1835
        %v1837 = vpop.f32.mrb[0].mxu0
        %v1838 = vpop.f32.mrb[0].mxu0
        %v1839 = vadd.f32 %v1789, %v1838
        %v1840 = vpop.f32.mrb[0].mxu0
        %1841 = vdwg.mxu0
        %v1842 = vpack.c.bf16 %v1739, %v1738
        %v1845 = vunpack.c.l.b16 %v1459
        %v1846 = vunpack.c.l.b16 %v1460
        %v1847 = vpack.c.b16 %v1846, %v1845
        %v1850 = vsel %vm695, %v1842, 0
        %1852 = vmatprep.subr.bf16.mxu0 0
        %1853 = vmatpush1.bf16.msra.mxu0 %v1847
        %1854 = vmatprep.subr.bf16.mxu0 0
        %1855 = vmatpush1.bf16.msra.mxu0 0
        %1856 = vmatprep.subr.bf16.mxu0 0
        %1857 = vmatpush1.bf16.msra.mxu0 0
        %1858 = vmatprep.subr.bf16.mxu0 0
        %1859 = vmatpush1.bf16.msra.mxu0 0
        %1860 = vmatprep.subr.bf16.mxu0 0
        %1861 = vmatpush1.bf16.msra.mxu0 0
        %1862 = vmatprep.subr.bf16.mxu0 0
        %1863 = vmatpush1.bf16.msra.mxu0 0
        %1864 = vmatprep.subr.bf16.mxu0 0
        %1865 = vmatpush1.bf16.msra.mxu0 0
        %1866 = vmatprep.subr.bf16.mxu0 0
        %1867 = vmatpush1.bf16.msra.mxu0 0
        %1868 = vmatprep.subr.bf16.mxu0 0
        %1869 = vmatpush1.bf16.msra.mxu0 0
        %1870 = vmatprep.subr.bf16.mxu0 0
        %1871 = vmatpush1.bf16.msra.mxu0 0
        %1872 = vmatprep.subr.bf16.mxu0 0
        %1873 = vmatpush1.bf16.msra.mxu0 0
        %1874 = vmatprep.subr.bf16.mxu0 0
        %1875 = vmatpush1.bf16.msra.mxu0 0
        %1876 = vmatprep.subr.bf16.mxu0 0
        %1877 = vmatpush1.bf16.msra.mxu0 0
        %1878 = vmatprep.subr.bf16.mxu0 0
        %1879 = vmatpush1.bf16.msra.mxu0 0
        %1880 = vmatprep.subr.bf16.mxu0 0
        %1881 = vmatpush1.bf16.msra.mxu0 0
        %1882 = vmatprep.subr.bf16.mxu0 0
        %1883 = vmatpush1.bf16.msra.mxu0 0
        %1884 = vmatprep.mubr.bf16.mxu0 0
        %1885 = vmatmul.mubr.bf16.gmra.mrb[0].mxu0 %v1850
        %v1886 = vpop.f32.mrb[0].mxu0
        %v1887 = vadd.f32 0.0, %v1886
        %v1888 = vpop.f32.mrb[0].mxu0
        %v1889 = vpop.f32.mrb[0].mxu0
        %v1890 = vadd.f32 0.0, %v1889
        %v1891 = vpop.f32.mrb[0].mxu0
        %1892 = vdwg.mxu0
        %v1893 = vadd.f32 %v1836, %v1887
        %v1894 = vadd.f32 %v1839, %v1890
        %v1896 = vlaneseq
        %v1897 = vshrl.u32 %v1896, 7
        %v1898 = vsub.s32 0, %v1897
        %v1899 = vrot.slane %v1468, %v1898
        %v1901 = vadd.f32 %v1893, %v1899
        %v1902 = vadd.f32 %v1894, %v1899
        %v1903 = vadd.f32 %v1901, %v1435
        %v1904 = vadd.f32 %v1902, %v1436
        %v1905 = vmax.f32 %v1903, 0.0
        %v1906 = vmax.f32 %v1904, 0.0
        %1907 = vst.msk [vmem:[%s464] sm:$0xff] %vm530, %v1905
        %1908 = vst.msk [vmem:[%s464 + $0x8] sm:$0xff] %vm530, %v1906
        %s1909 = sand.u32 %s323, 1
        %s1910 = scalar_lea.sflag [#allocation3], %s1909
        %s1911 = sand.u32 %s323, 1
        %s1912 = smul.addr %s1911, 16
        %s1913 = scalar_lea.vmem [#allocation2], %s1912
        // Predicated region
        $region73: #{gcn_forward.1} parent=71 // pred_check
          %p1914 = pneg %p333
        $region74: #{gcn_forward.1} parent=71 // pred_check_branch
          %1916 = sbr.rel (%p1914) target = $region76
        $region75: #{gcn_forward.1} parent=71 // pred_region
          %s1917 = smul.u32 2, %s27
          %s1919 = ssub.s32 256, 256
          %1920 = vsyncadd %s1910, %s1919
          %s1921 = smul.addr %s1917, 128
          %s1922 = scalar_lea.hbm %s13, %s1921
          %s1923 = sshll.u32 %s1913, 4
          %s1924 = int_to_ptr.vmem [resolvable:$true] %s1923
          %1929 = dma.vmem_to_hbm [thread:$0]  %s1924, 256, %s1922, %s1910, 128, 128, 8
        $region76: #{gcn_forward.1} parent=71 // pred_fallthru
          _
      $region72: #{gcn_forward.1} parent=5 // pred_fallthru
        _
      %p1930 = scmp.le.s32.totalorder 2, %s22
      // Predicated region
      $region77: #{gcn_forward.1} parent=5 // pred_check
        %p1931 = pneg %p1930
      $region78: #{gcn_forward.1} parent=5 // pred_check_branch
        %1933 = sbr.rel (%p1931) target = $region80
      $region79: #{gcn_forward.1} parent=5 // pred_region
        %s1934 = ssub.s32 %s22, 2
        // Predicated region
        $region81: #{gcn_forward.1} parent=79 // pred_check
          %p1935 = pneg %p339
        $region82: #{gcn_forward.1} parent=79 // pred_check_branch
          %1937 = sbr.rel (%p1935) target = $region84
        $region83: #{gcn_forward.1} parent=79 // pred_region
          %s1938 = sand.u32 %s324, 1
          %s1939 = scalar_lea.sflag [#allocation3], %s1938
          %s1940 = sand.u32 %s324, 1
          %s1941 = smul.addr %s1940, 16
          %s1942 = scalar_lea.vmem [#allocation2], %s1941
          %1943 = dma.done %s1939, 256
        $region84: #{gcn_forward.1} parent=79 // pred_fallthru
          _
      $region80: #{gcn_forward.1} parent=5 // pred_fallthru
        _
    $region6: #{gcn_forward.1} parent=1 // loop_footer
      %s26 = sadd.s32 1, %s22
    $region7: #{gcn_forward.1} parent=1 // loop_footer_branch
      %21 = sbr.rel target = $region3
    $region8: #{gcn_forward.1} parent=1 // loop_exit
      _
    %1944 = vsyncpa [#allocation3], 1
    %s1945 = scalar_lea.sflag [#allocation3], 1
    %1946 = vsyncpa %s1945, 1

</llo_original>
